<compile_context>
chip_gen: v5e
topology: v5e:2x2
jax: 0.10.0
libtpu: 0.0.40
codegen_flags: <defaults>
</compile_context>

<pallas_src>
import functools

import jax
import jax.numpy as jnp
import numpy as np
from jax import lax
from jax.experimental import pallas as pl
from jax.experimental.pallas import tpu as pltpu

HIDDEN = 768  # fixed by the module: self.hidden_dim = 768


def _round_up(x, m):
    return (x + m - 1) // m * m


def _bert_crf_kernel(T, T_tile, x_ref, wt_ref, b_ref, start_ref, end_ref, transT_ref,
                     tags_ref, score_ref, em_ref, hist_ref):
    """Grid = (batch tiles [parallel], time tiles [arbitrary]).

    x_ref      : (B_tile, T_tile, H) f32   natural-layout tile of BERT features
    wt_ref     : (H, K)   bf16             hidden2tag.weight^T
    b_ref      : (1, K)   f32              hidden2tag.bias
    start_ref  : (K, 1)   f32              CRF start transitions
    end_ref    : (K, 1)   f32              CRF end transitions
    transT_ref : (K, K)   f32              CRF transitions, transposed: [cur, prev]
    tags_ref   : (T_pad, 1, B_tile) i32    decoded tags (time-major, batch on lanes)
    score_ref  : (K, B_tile)        f32    running Viterbi score, carried across ti
    em_ref     : (B_tile, T_tile, K) f32   this tile's emissions
    hist_ref   : (T_pad, K, B_tile) i32    Viterbi backpointers (all timesteps)
    """
    ti = pl.program_id(1)
    n_t = pl.num_programs(1)
    B = x_ref.shape[0]
    H = x_ref.shape[2]
    K = transT_ref.shape[0]
    t0 = pl.multiple_of(ti * T_tile, T_tile)
    guard = (T % T_tile) != 0          # static: last tile contains padded timesteps

    # ---- phase 0: fresh output block for this batch tile (no stale VMEM writeback) ----
    @pl.when(ti == 0)
    def _zero_out():
        tags_ref[...] = jnp.zeros_like(tags_ref)

    # ---- phase 1: emissions for this time tile (bf16 MXU dots, f32 accumulate) ----
    wt = wt_ref[...]                   # (H, K) bf16
    b_row = b_ref[...]                 # (1, K) f32
    g = max(1, 128 // T_tile)          # batch rows per dot (~128 MXU rows per dot)
    for b0 in range(0, B, g):
        gb = min(g, B - b0)
        xc = x_ref[b0:b0 + gb].reshape(gb * T_tile, H).astype(jnp.bfloat16)
        emc = jnp.dot(xc, wt, preferred_element_type=jnp.float32) + b_row   # (gb*T_tile, K)
        em_ref[b0:b0 + gb] = emc.reshape(gb, T_tile, K)

    # ---- phase 2: Viterbi forward recursion over this tile's timesteps ----
    transT = transT_ref[...]                                          # (Kc, Kp)
    # loop-invariant broadcasts hoisted out of the unrolled serial loop
    trans_b = [jnp.broadcast_to(transT[:, kp:kp + 1], (K, B)) for kp in range(K)]

    def em_kb(tt):
        return jnp.transpose(em_ref[:, tt, :])                        # (K, B)

    def fwd_step(tt, score):
        """One Viterbi max-recursion step; returns the new (K, B) score."""
        # running (max, first-argmax) scan over the K previous tags
        best = score[0:1, :] + trans_b[0]                             # (Kc, B)
        best_idx = jnp.zeros((K, B), jnp.int32)
        for kp in range(1, K):
            cand = score[kp:kp + 1, :] + trans_b[kp]
            better = cand > best                                      # strict > keeps first argmax
            best = jnp.where(better, cand, best)
            best_idx = jnp.where(better, kp, best_idx)
        hist_ref[t0 + tt] = best_idx
        # emission is constant over the prev-tag axis -> add it after the max.
        new = best + em_kb(tt)
        if guard:
            new = jnp.where(t0 + tt < T, new, score)                  # ignore padded steps
        return new

    @pl.when(ti == 0)
    def _first_step():
        score_ref[...] = start_ref[...] + em_kb(0)

    @pl.when(ti > 0)
    def _cont_step():
        score_ref[...] = fwd_step(0, score_ref[...])

    score = score_ref[...]
    for tt in range(1, T_tile):
        score = fwd_step(tt, score)
    score_ref[...] = score

    # ---- phase 3: termination + backtrack once the last real timestep is folded in ----
    @pl.when(ti == n_t - 1)
    def _decode():
        iota_kb = lax.broadcasted_iota(jnp.int32, (K, B), 0)
        final = score_ref[...] + end_ref[...]                         # (K, B)
        m = jnp.max(final, axis=0, keepdims=True)                     # (1, B)
        last = jnp.min(jnp.where(final == m, iota_kb, K), axis=0,
                       keepdims=True).astype(jnp.int32)               # (1, B)
        tags_ref[T - 1] = last

        unroll = True if T <= 64 else 8

        def back_step(i, cur):
            t = T - 2 - i
            hist = hist_ref[t + 1]                                    # (K, B)
            onehot = iota_kb == cur                                   # (K, B)
            prev = jnp.sum(jnp.where(onehot, hist, 0), axis=0,
                           keepdims=True).astype(jnp.int32)           # (1, B)
            tags_ref[t] = prev
            return prev

        lax.fori_loop(0, T - 1, back_step, last, unroll=unroll)


def bert_crf_forward(features, params, *, t_tile=32):
    """features: (B, T, 768) float32 -> tags: (B, T) int32 (CRF Viterbi decode)."""
    B, T, H = features.shape
    W, b = params["w"], params["b"]                    # hidden2tag: (K, H), (K,)
    start, end, trans = params["start"], params["end"], params["trans"]
    K = W.shape[0]

    # batch tiling: H stays on lanes, so B is a free leading dim.  Split into 128-row
    # tiles only when B > 128 (>=2 grid steps -> both v7x TensorCores get work).
    if B > 128:
        B_tile, B_pad = 128, _round_up(B, 128)
    else:
        B_tile = B_pad = B

    # time tiling: multiple of 8 (sublane) so the in-kernel reshapes stay layout-trivial
    T_tile = min(_round_up(max(t_tile, 8), 8), _round_up(T, 8))

    def vmem_needed(tt):
        def padded(shape, itemsize):
            sub = 16 if itemsize == 2 else 8
            dims = list(shape)
            dims[-1] = _round_up(dims[-1], 128)        # lane padding
            if len(dims) >= 2:
                dims[-2] = _round_up(dims[-2], sub)    # sublane padding
            n = 1
            for d in dims:
                n *= d
            return n * itemsize

        tp = _round_up(T, tt)
        est = 2 * padded((B_tile, tt, H), 4)           # x double buffer (f32)
        est += 2 * padded((H, K), 2)                   # weight^T (bf16)
        est += 8 * padded((K, K), 4)                   # bias/start/end/trans (generous)
        est += padded((tp, 1, B_tile), 4)              # resident output block
        est += padded((K, B_tile), 4)                  # score scratch
        est += padded((B_tile, tt, K), 4)              # per-tile emission scratch
        est += padded((tp, K, B_tile), 4)              # backpointer scratch
        return est

    try:
        phys = int(getattr(pltpu.get_tpu_info(), "vmem_capacity_bytes"))
    except Exception:                                  # fall back to the smallest (v7x)
        phys = 64 * 2**20
    budget = int(0.8 * phys)
    while vmem_needed(T_tile) > budget and T_tile > 8:
        T_tile = max(8, (T_tile // 16) * 8)            # shrink, staying a multiple of 8
    T_pad = _round_up(T, T_tile)
    vmem_limit = int(min(budget, max(32 * 2**20, vmem_needed(T_tile) + (4 << 20))))

    x = features
    if x.dtype != jnp.float32:
        x = x.astype(jnp.float32)
    if B_pad != B or T_pad != T:
        # only pads the ragged tail; x is otherwise consumed in its natural layout
        x = jnp.pad(x, ((0, B_pad - B), (0, T_pad - T), (0, 0)))

    wt = jnp.transpose(W).astype(jnp.bfloat16)         # (H, K)
    b_row = b.reshape(1, K).astype(jnp.float32)
    s_col = start.reshape(K, 1).astype(jnp.float32)
    e_col = end.reshape(K, 1).astype(jnp.float32)
    tr_t = jnp.transpose(trans).astype(jnp.float32)    # [cur, prev]

    n_b = B_pad // B_tile
    n_t = T_pad // T_tile

    kernel = functools.partial(_bert_crf_kernel, T, T_tile)

    tags_t1b = pl.pallas_call(
        kernel,
        out_shape=jax.ShapeDtypeStruct((T_pad, 1, B_pad), jnp.int32),
        grid_spec=pltpu.PrefetchScalarGridSpec(
            num_scalar_prefetch=0,
            grid=(n_b, n_t),
            in_specs=[
                pl.BlockSpec((B_tile, T_tile, H), lambda bi, ti: (bi, ti, 0)),
                pl.BlockSpec((H, K), lambda bi, ti: (0, 0)),
                pl.BlockSpec((1, K), lambda bi, ti: (0, 0)),
                pl.BlockSpec((K, 1), lambda bi, ti: (0, 0)),
                pl.BlockSpec((K, 1), lambda bi, ti: (0, 0)),
                pl.BlockSpec((K, K), lambda bi, ti: (0, 0)),
            ],
            out_specs=pl.BlockSpec((T_pad, 1, B_tile), lambda bi, ti: (0, 0, bi)),
            scratch_shapes=[
                pltpu.VMEM((K, B_tile), jnp.float32),           # running Viterbi score
                pltpu.VMEM((B_tile, T_tile, K), jnp.float32),   # this tile's emissions
                pltpu.VMEM((T_pad, K, B_tile), jnp.int32),      # backpointers
            ],
        ),
        compiler_params=pltpu.CompilerParams(
            dimension_semantics=("parallel", "arbitrary"),
            vmem_limit_bytes=vmem_limit,
        ),
    )(x, wt, b_row, s_col, e_col, tr_t)

    return jnp.transpose(tags_t1b[:T, 0, :B], (1, 0))   # (B, T) int32


def _bf16_emissions(features, params):
    """Same bf16 feature/weight cast as the kernel, f32-accumulated."""
    feats = jnp.einsum("bth,kh->btk",
                       features.astype(jnp.bfloat16),
                       params["w"].astype(jnp.bfloat16),
                       preferred_element_type=jnp.float32) + params["b"]
    return feats                                                     # (B, T, K)


def _viterbi_reference(features, params):
    """Plain-JAX reference mirroring torchcrf CRF.decode (mask = all ones)."""
    start, end, trans = params["start"], params["end"], params["trans"]
    feats = _bf16_emissions(features, params)                        # (B, T, K)
    B, T, K = feats.shape
    score = start[None, :] + feats[:, 0, :]
    hist = []
    for t in range(1, T):
        nxt = score[:, :, None] + trans[None, :, :] + feats[:, t, None, :]
        hist.append(jnp.argmax(nxt, axis=1))
        score = jnp.max(nxt, axis=1)
    score = score + end[None, :]
    last = jnp.argmax(score, axis=1)
    tags = [last]
    for h in reversed(hist):
        last = jnp.take_along_axis(h, last[:, None], axis=1)[:, 0]
        tags.append(last)
    tags.reverse()
    return jnp.stack(tags, axis=1).astype(jnp.int32)


def _path_score(features, params, tags):
    """CRF score of a given tag path (for tie-aware comparison)."""
    start, end, trans = params["start"], params["end"], params["trans"]
    feats = _bf16_emissions(features, params)                        # (B, T, K)
    em = jnp.take_along_axis(feats, tags[:, :, None], axis=2)[:, :, 0]   # (B, T)
    tr = trans[tags[:, :-1], tags[:, 1:]]                                # (B, T-1)
    return start[tags[:, 0]] + em.sum(axis=1) + tr.sum(axis=1) + end[tags[:, -1]]


if __name__ == "__main__":
    # tag_to_ix determines tagset_size, mirroring the module's __init__.
    tag_to_ix = {"O": 0, "B-PER": 1, "I-PER": 2, "B-LOC": 3,
                 "I-LOC": 4, "B-ORG": 5, "I-ORG": 6, "<STOP>": 7}
    K = len(tag_to_ix)
    B, T = 2, 8

    key = jax.random.PRNGKey(0)
    kx, kw, kb, ks, ke, kt = jax.random.split(key, 6)
    # "sentences" are already BERT features in this module: [B, T, 768]
    features = jax.random.normal(kx, (B, T, HIDDEN), dtype=jnp.float32)
    params = {
        "w": jax.random.normal(kw, (K, HIDDEN), dtype=jnp.float32) * 0.05,   # hidden2tag.weight
        "b": jax.random.normal(kb, (K,), dtype=jnp.float32) * 0.05,          # hidden2tag.bias
        "start": jax.random.uniform(ks, (K,), minval=-0.1, maxval=0.1,
                                    dtype=jnp.float32),                      # crf.start_transitions
        "end": jax.random.uniform(ke, (K,), minval=-0.1, maxval=0.1,
                                  dtype=jnp.float32),                        # crf.end_transitions
        "trans": jax.random.uniform(kt, (K, K), minval=-0.1, maxval=0.1,
                                    dtype=jnp.float32),                      # crf.transitions
    }

    fwd = jax.jit(bert_crf_forward)
    tags = jax.block_until_ready(fwd(features, params))
    assert tags.shape == (B, T) and tags.dtype == jnp.int32

    ref = _viterbi_reference(features, params)
    if not np.array_equal(np.asarray(tags), np.asarray(ref)):
        # bf16 matmul accumulation-order ULPs can flip exact argmax ties; accept the
        # kernel path iff it achieves the same CRF path score as the reference path.
        np.testing.assert_allclose(np.asarray(_path_score(features, params, tags)),
                                   np.asarray(_path_score(features, params, ref)),
                                   rtol=0, atol=1e-3)
    # TODO(synk): CRF neg_log_likelihood (training loss / log-partition) and the
    # mask=True variable-length decode path are not part of forward() and are omitted.
    print("KERNEL_OK")
</pallas_src>

<mosaic_0001>
module attributes {stable_mosaic.version = 11 : i64} {
  func.func @_bert_crf_kernel(%arg0: i32, %arg1: i32, %arg2: memref<2x8x768xf32, #tpu.memory_space<vmem>>, %arg3: memref<768x8xbf16, #tpu.memory_space<vmem>>, %arg4: memref<1x8xf32, #tpu.memory_space<vmem>>, %arg5: memref<8x1xf32, #tpu.memory_space<vmem>>, %arg6: memref<8x1xf32, #tpu.memory_space<vmem>>, %arg7: memref<8x8xf32, #tpu.memory_space<vmem>>, %arg8: memref<8x1x2xi32, #tpu.memory_space<vmem>>, %arg9: memref<8x2xf32, #tpu.memory_space<vmem>>, %arg10: memref<2x8x8xf32, #tpu.memory_space<vmem>>, %arg11: memref<8x8x2xi32, #tpu.memory_space<vmem>>) attributes {dimension_semantics = [#tpu.dimension_semantics<parallel>, #tpu.dimension_semantics<arbitrary>], iteration_bounds = array<i64: 1, 1>, scalar_prefetch = 0 : i64, scratch_operands = 3 : i64, tpu.core_type = #tpu.core_type<tc>, window_params = [{transform_indices = @transform_0, window_bounds = array<i64: 2, 8, 768>}, {pipeline_mode = #tpu.pipeline_mode<synchronous>, transform_indices = @transform_1, window_bounds = array<i64: 768, 8>}, {pipeline_mode = #tpu.pipeline_mode<synchronous>, transform_indices = @transform_2, window_bounds = array<i64: 1, 8>}, {pipeline_mode = #tpu.pipeline_mode<synchronous>, transform_indices = @transform_3, window_bounds = array<i64: 8, 1>}, {pipeline_mode = #tpu.pipeline_mode<synchronous>, transform_indices = @transform_4, window_bounds = array<i64: 8, 1>}, {pipeline_mode = #tpu.pipeline_mode<synchronous>, transform_indices = @transform_5, window_bounds = array<i64: 8, 8>}, {transform_indices = @transform_6, window_bounds = array<i64: 8, 1, 2>}]} {
    %c8_i32 = arith.constant 8 : i32
    %0 = arith.muli %arg1, %c8_i32 : i32
    %1 = tpu.assume_multiple %0, 8 : i32
    %c0_i32 = arith.constant 0 : i32
    %2 = arith.cmpi eq, %arg1, %c0_i32 : i32
    %3 = arith.extui %2 : i1 to i32
    %c0_i32_0 = arith.constant 0 : i32
    %4 = arith.cmpi ne, %3, %c0_i32_0 : i32
    scf.if %4 {
      %c0_i32_106 = arith.constant 0 : i32
      %485 = vector.broadcast %c0_i32_106 : i32 to vector<8x1x2xi32>
      %c0_107 = arith.constant 0 : index
      %c0_108 = arith.constant 0 : index
      %c0_109 = arith.constant 0 : index
      %486 = vector.load %arg8[%c0_107, %c0_108, %c0_109] : memref<8x1x2xi32, #tpu.memory_space<vmem>>, vector<8x1x2xi32>
      tpu.vector_store %arg8[%c0_107, %c0_108, %c0_109], %485 {strides = array<i32>} : memref<8x1x2xi32, #tpu.memory_space<vmem>>, vector<8x1x2xi32>,
    } else {
    }
    %c0 = arith.constant 0 : index
    %c0_1 = arith.constant 0 : index
    %5 = vector.load %arg3[%c0, %c0_1] : memref<768x8xbf16, #tpu.memory_space<vmem>>, vector<768x8xbf16>
    %c0_2 = arith.constant 0 : index
    %c0_3 = arith.constant 0 : index
    %6 = vector.load %arg4[%c0_2, %c0_3] : memref<1x8xf32, #tpu.memory_space<vmem>>, vector<1x8xf32>
    %c0_4 = arith.constant 0 : index
    %c0_5 = arith.constant 0 : index
    %c0_6 = arith.constant 0 : index
    %7 = vector.load %arg2[%c0_4, %c0_5, %c0_6] : memref<2x8x768xf32, #tpu.memory_space<vmem>>, vector<2x8x768xf32>
    %8 = vector.shape_cast %7 : vector<2x8x768xf32> to vector<16x768xf32>
    %9 = arith.truncf %8 : vector<16x768xf32> to vector<16x768xbf16>
    %cst = arith.constant dense<0.000000e+00> : vector<16x8xf32>
    %10 = tpu.matmul %9, %5, %cst {dimension_numbers = #tpu.dot_dimension_numbers<[1], [0], [0], [1], [0, 0, 1, 1], [], []>} : vector<16x768xbf16>, vector<768x8xbf16>, vector<16x8xf32> -> vector<16x8xf32>
    %11 = vector.broadcast %6 : vector<1x8xf32> to vector<16x8xf32>
    %12 = arith.addf %10, %11 : vector<16x8xf32>
    %13 = vector.shape_cast %12 : vector<16x8xf32> to vector<2x8x8xf32>
    %c0_7 = arith.constant 0 : index
    %c0_8 = arith.constant 0 : index
    %c0_9 = arith.constant 0 : index
    %14 = vector.load %arg10[%c0_7, %c0_8, %c0_9] : memref<2x8x8xf32, #tpu.memory_space<vmem>>, vector<2x8x8xf32>
    tpu.vector_store %arg10[%c0_7, %c0_8, %c0_9], %13 {strides = array<i32>} : memref<2x8x8xf32, #tpu.memory_space<vmem>>, vector<2x8x8xf32>,
    %c0_10 = arith.constant 0 : index
    %c0_11 = arith.constant 0 : index
    %15 = vector.load %arg7[%c0_10, %c0_11] : memref<8x8xf32, #tpu.memory_space<vmem>>, vector<8x8xf32>
    %16 = vector.extract_strided_slice %15 {offsets = [0, 0], sizes = [8, 1], strides = [1, 1]} : vector<8x8xf32> to vector<8x1xf32>
    %17 = vector.shape_cast %16 : vector<8x1xf32> to vector<8x1xf32>
    %18 = vector.broadcast %17 : vector<8x1xf32> to vector<8x2xf32>
    %19 = vector.extract_strided_slice %15 {offsets = [0, 1], sizes = [8, 1], strides = [1, 1]} : vector<8x8xf32> to vector<8x1xf32>
    %20 = vector.shape_cast %19 : vector<8x1xf32> to vector<8x1xf32>
    %21 = vector.broadcast %20 : vector<8x1xf32> to vector<8x2xf32>
    %22 = vector.extract_strided_slice %15 {offsets = [0, 2], sizes = [8, 1], strides = [1, 1]} : vector<8x8xf32> to vector<8x1xf32>
    %23 = vector.shape_cast %22 : vector<8x1xf32> to vector<8x1xf32>
    %24 = vector.broadcast %23 : vector<8x1xf32> to vector<8x2xf32>
    %25 = vector.extract_strided_slice %15 {offsets = [0, 3], sizes = [8, 1], strides = [1, 1]} : vector<8x8xf32> to vector<8x1xf32>
    %26 = vector.shape_cast %25 : vector<8x1xf32> to vector<8x1xf32>
    %27 = vector.broadcast %26 : vector<8x1xf32> to vector<8x2xf32>
    %28 = vector.extract_strided_slice %15 {offsets = [0, 4], sizes = [8, 1], strides = [1, 1]} : vector<8x8xf32> to vector<8x1xf32>
    %29 = vector.shape_cast %28 : vector<8x1xf32> to vector<8x1xf32>
    %30 = vector.broadcast %29 : vector<8x1xf32> to vector<8x2xf32>
    %31 = vector.extract_strided_slice %15 {offsets = [0, 5], sizes = [8, 1], strides = [1, 1]} : vector<8x8xf32> to vector<8x1xf32>
    %32 = vector.shape_cast %31 : vector<8x1xf32> to vector<8x1xf32>
    %33 = vector.broadcast %32 : vector<8x1xf32> to vector<8x2xf32>
    %34 = vector.extract_strided_slice %15 {offsets = [0, 6], sizes = [8, 1], strides = [1, 1]} : vector<8x8xf32> to vector<8x1xf32>
    %35 = vector.shape_cast %34 : vector<8x1xf32> to vector<8x1xf32>
    %36 = vector.broadcast %35 : vector<8x1xf32> to vector<8x2xf32>
    %37 = vector.extract_strided_slice %15 {offsets = [0, 7], sizes = [8, 1], strides = [1, 1]} : vector<8x8xf32> to vector<8x1xf32>
    %38 = vector.shape_cast %37 : vector<8x1xf32> to vector<8x1xf32>
    %39 = vector.broadcast %38 : vector<8x1xf32> to vector<8x2xf32>
    %c0_i32_12 = arith.constant 0 : i32
    %40 = arith.cmpi eq, %arg1, %c0_i32_12 : i32
    %41 = arith.extui %40 : i1 to i32
    %c0_i32_13 = arith.constant 0 : i32
    %42 = arith.cmpi ne, %41, %c0_i32_13 : i32
    scf.if %42 {
      %c0_106 = arith.constant 0 : index
      %c0_107 = arith.constant 0 : index
      %485 = vector.load %arg5[%c0_106, %c0_107] : memref<8x1xf32, #tpu.memory_space<vmem>>, vector<8x1xf32>
      %c0_108 = arith.constant 0 : index
      %c0_109 = arith.constant 0 : index
      %c0_110 = arith.constant 0 : index
      %486 = vector.load %arg10[%c0_108, %c0_109, %c0_110] : memref<2x8x8xf32, #tpu.memory_space<vmem>>, vector<2x1x8xf32>
      %487 = vector.shape_cast %486 : vector<2x1x8xf32> to vector<2x8xf32>
      %488 = tpu.transpose %487, [1, 0] : vector<2x8xf32> -> vector<8x2xf32>
      %489 = vector.broadcast %485 : vector<8x1xf32> to vector<8x2xf32>
      %490 = arith.addf %489, %488 : vector<8x2xf32>
      %c0_111 = arith.constant 0 : index
      %c0_112 = arith.constant 0 : index
      %491 = vector.load %arg9[%c0_111, %c0_112] : memref<8x2xf32, #tpu.memory_space<vmem>>, vector<8x2xf32>
      tpu.vector_store %arg9[%c0_111, %c0_112], %490 {strides = array<i32>} : memref<8x2xf32, #tpu.memory_space<vmem>>, vector<8x2xf32>,
    } else {
    }
    %c0_i32_14 = arith.constant 0 : i32
    %43 = arith.cmpi sgt, %arg1, %c0_i32_14 : i32
    %44 = arith.extui %43 : i1 to i32
    %c0_i32_15 = arith.constant 0 : i32
    %45 = arith.cmpi ne, %44, %c0_i32_15 : i32
    scf.if %45 {
      %c0_106 = arith.constant 0 : index
      %c0_107 = arith.constant 0 : index
      %485 = vector.load %arg9[%c0_106, %c0_107] : memref<8x2xf32, #tpu.memory_space<vmem>>, vector<8x2xf32>
      %486 = vector.extract_strided_slice %485 {offsets = [0, 0], sizes = [1, 2], strides = [1, 1]} : vector<8x2xf32> to vector<1x2xf32>
      %487 = vector.broadcast %486 : vector<1x2xf32> to vector<8x2xf32>
      %488 = arith.addf %487, %18 : vector<8x2xf32>
      %c0_i32_108 = arith.constant 0 : i32
      %489 = vector.broadcast %c0_i32_108 : i32 to vector<8x2xi32>
      %490 = vector.extract_strided_slice %485 {offsets = [1, 0], sizes = [1, 2], strides = [1, 1]} : vector<8x2xf32> to vector<1x2xf32>
      %491 = vector.broadcast %490 : vector<1x2xf32> to vector<8x2xf32>
      %492 = arith.addf %491, %21 : vector<8x2xf32>
      %493 = arith.cmpf ogt, %492, %488 : vector<8x2xf32>
      %494 = arith.select %493, %492, %488 : vector<8x2xi1>, vector<8x2xf32>
      %c1_i32_109 = arith.constant 1 : i32
      %495 = vector.broadcast %c1_i32_109 : i32 to vector<8x2xi32>
      %496 = arith.select %493, %495, %489 : vector<8x2xi1>, vector<8x2xi32>
      %497 = vector.extract_strided_slice %485 {offsets = [2, 0], sizes = [1, 2], strides = [1, 1]} : vector<8x2xf32> to vector<1x2xf32>
      %498 = vector.broadcast %497 : vector<1x2xf32> to vector<8x2xf32>
      %499 = arith.addf %498, %24 : vector<8x2xf32>
      %500 = arith.cmpf ogt, %499, %494 : vector<8x2xf32>
      %501 = arith.select %500, %499, %494 : vector<8x2xi1>, vector<8x2xf32>
      %c2_i32_110 = arith.constant 2 : i32
      %502 = vector.broadcast %c2_i32_110 : i32 to vector<8x2xi32>
      %503 = arith.select %500, %502, %496 : vector<8x2xi1>, vector<8x2xi32>
      %504 = vector.extract_strided_slice %485 {offsets = [3, 0], sizes = [1, 2], strides = [1, 1]} : vector<8x2xf32> to vector<1x2xf32>
      %505 = vector.broadcast %504 : vector<1x2xf32> to vector<8x2xf32>
      %506 = arith.addf %505, %27 : vector<8x2xf32>
      %507 = arith.cmpf ogt, %506, %501 : vector<8x2xf32>
      %508 = arith.select %507, %506, %501 : vector<8x2xi1>, vector<8x2xf32>
      %c3_i32_111 = arith.constant 3 : i32
      %509 = vector.broadcast %c3_i32_111 : i32 to vector<8x2xi32>
      %510 = arith.select %507, %509, %503 : vector<8x2xi1>, vector<8x2xi32>
      %511 = vector.extract_strided_slice %485 {offsets = [4, 0], sizes = [1, 2], strides = [1, 1]} : vector<8x2xf32> to vector<1x2xf32>
      %512 = vector.broadcast %511 : vector<1x2xf32> to vector<8x2xf32>
      %513 = arith.addf %512, %30 : vector<8x2xf32>
      %514 = arith.cmpf ogt, %513, %508 : vector<8x2xf32>
      %515 = arith.select %514, %513, %508 : vector<8x2xi1>, vector<8x2xf32>
      %c4_i32_112 = arith.constant 4 : i32
      %516 = vector.broadcast %c4_i32_112 : i32 to vector<8x2xi32>
      %517 = arith.select %514, %516, %510 : vector<8x2xi1>, vector<8x2xi32>
      %518 = vector.extract_strided_slice %485 {offsets = [5, 0], sizes = [1, 2], strides = [1, 1]} : vector<8x2xf32> to vector<1x2xf32>
      %519 = vector.broadcast %518 : vector<1x2xf32> to vector<8x2xf32>
      %520 = arith.addf %519, %33 : vector<8x2xf32>
      %521 = arith.cmpf ogt, %520, %515 : vector<8x2xf32>
      %522 = arith.select %521, %520, %515 : vector<8x2xi1>, vector<8x2xf32>
      %c5_i32_113 = arith.constant 5 : i32
      %523 = vector.broadcast %c5_i32_113 : i32 to vector<8x2xi32>
      %524 = arith.select %521, %523, %517 : vector<8x2xi1>, vector<8x2xi32>
      %525 = vector.extract_strided_slice %485 {offsets = [6, 0], sizes = [1, 2], strides = [1, 1]} : vector<8x2xf32> to vector<1x2xf32>
      %526 = vector.broadcast %525 : vector<1x2xf32> to vector<8x2xf32>
      %527 = arith.addf %526, %36 : vector<8x2xf32>
      %528 = arith.cmpf ogt, %527, %522 : vector<8x2xf32>
      %529 = arith.select %528, %527, %522 : vector<8x2xi1>, vector<8x2xf32>
      %c6_i32_114 = arith.constant 6 : i32
      %530 = vector.broadcast %c6_i32_114 : i32 to vector<8x2xi32>
      %531 = arith.select %528, %530, %524 : vector<8x2xi1>, vector<8x2xi32>
      %532 = vector.extract_strided_slice %485 {offsets = [7, 0], sizes = [1, 2], strides = [1, 1]} : vector<8x2xf32> to vector<1x2xf32>
      %533 = vector.broadcast %532 : vector<1x2xf32> to vector<8x2xf32>
      %534 = arith.addf %533, %39 : vector<8x2xf32>
      %535 = arith.cmpf ogt, %534, %529 : vector<8x2xf32>
      %536 = arith.select %535, %534, %529 : vector<8x2xi1>, vector<8x2xf32>
      %c7_i32_115 = arith.constant 7 : i32
      %537 = vector.broadcast %c7_i32_115 : i32 to vector<8x2xi32>
      %538 = arith.select %535, %537, %531 : vector<8x2xi1>, vector<8x2xi32>
      %c0_i32_116 = arith.constant 0 : i32
      %539 = arith.addi %1, %c0_i32_116 : i32
      %540 = arith.index_cast %539 : i32 to index
      %c0_117 = arith.constant 0 : index
      %c0_118 = arith.constant 0 : index
      %541 = vector.load %arg11[%540, %c0_117, %c0_118] : memref<8x8x2xi32, #tpu.memory_space<vmem>>, vector<1x8x2xi32>
      %542 = vector.shape_cast %541 : vector<1x8x2xi32> to vector<8x2xi32>
      %543 = vector.shape_cast %538 : vector<8x2xi32> to vector<1x8x2xi32>
      tpu.vector_store %arg11[%540, %c0_117, %c0_118], %543 {strides = array<i32>} : memref<8x8x2xi32, #tpu.memory_space<vmem>>, vector<1x8x2xi32>,
      %c0_119 = arith.constant 0 : index
      %c0_120 = arith.constant 0 : index
      %c0_121 = arith.constant 0 : index
      %544 = vector.load %arg10[%c0_119, %c0_120, %c0_121] : memref<2x8x8xf32, #tpu.memory_space<vmem>>, vector<2x1x8xf32>
      %545 = vector.shape_cast %544 : vector<2x1x8xf32> to vector<2x8xf32>
      %546 = tpu.transpose %545, [1, 0] : vector<2x8xf32> -> vector<8x2xf32>
      %547 = arith.addf %536, %546 : vector<8x2xf32>
      %c0_122 = arith.constant 0 : index
      %c0_123 = arith.constant 0 : index
      %548 = vector.load %arg9[%c0_122, %c0_123] : memref<8x2xf32, #tpu.memory_space<vmem>>, vector<8x2xf32>
      tpu.vector_store %arg9[%c0_122, %c0_123], %547 {strides = array<i32>} : memref<8x2xf32, #tpu.memory_space<vmem>>, vector<8x2xf32>,
    } else {
    }
    %c0_16 = arith.constant 0 : index
    %c0_17 = arith.constant 0 : index
    %46 = vector.load %arg9[%c0_16, %c0_17] : memref<8x2xf32, #tpu.memory_space<vmem>>, vector<8x2xf32>
    %47 = vector.extract_strided_slice %46 {offsets = [0, 0], sizes = [1, 2], strides = [1, 1]} : vector<8x2xf32> to vector<1x2xf32>
    %48 = vector.broadcast %47 : vector<1x2xf32> to vector<8x2xf32>
    %49 = arith.addf %48, %18 : vector<8x2xf32>
    %c0_i32_18 = arith.constant 0 : i32
    %50 = vector.broadcast %c0_i32_18 : i32 to vector<8x2xi32>
    %51 = vector.extract_strided_slice %46 {offsets = [1, 0], sizes = [1, 2], strides = [1, 1]} : vector<8x2xf32> to vector<1x2xf32>
    %52 = vector.broadcast %51 : vector<1x2xf32> to vector<8x2xf32>
    %53 = arith.addf %52, %21 : vector<8x2xf32>
    %54 = arith.cmpf ogt, %53, %49 : vector<8x2xf32>
    %55 = arith.select %54, %53, %49 : vector<8x2xi1>, vector<8x2xf32>
    %c1_i32 = arith.constant 1 : i32
    %56 = vector.broadcast %c1_i32 : i32 to vector<8x2xi32>
    %57 = arith.select %54, %56, %50 : vector<8x2xi1>, vector<8x2xi32>
    %58 = vector.extract_strided_slice %46 {offsets = [2, 0], sizes = [1, 2], strides = [1, 1]} : vector<8x2xf32> to vector<1x2xf32>
    %59 = vector.broadcast %58 : vector<1x2xf32> to vector<8x2xf32>
    %60 = arith.addf %59, %24 : vector<8x2xf32>
    %61 = arith.cmpf ogt, %60, %55 : vector<8x2xf32>
    %62 = arith.select %61, %60, %55 : vector<8x2xi1>, vector<8x2xf32>
    %c2_i32 = arith.constant 2 : i32
    %63 = vector.broadcast %c2_i32 : i32 to vector<8x2xi32>
    %64 = arith.select %61, %63, %57 : vector<8x2xi1>, vector<8x2xi32>
    %65 = vector.extract_strided_slice %46 {offsets = [3, 0], sizes = [1, 2], strides = [1, 1]} : vector<8x2xf32> to vector<1x2xf32>
    %66 = vector.broadcast %65 : vector<1x2xf32> to vector<8x2xf32>
    %67 = arith.addf %66, %27 : vector<8x2xf32>
    %68 = arith.cmpf ogt, %67, %62 : vector<8x2xf32>
    %69 = arith.select %68, %67, %62 : vector<8x2xi1>, vector<8x2xf32>
    %c3_i32 = arith.constant 3 : i32
    %70 = vector.broadcast %c3_i32 : i32 to vector<8x2xi32>
    %71 = arith.select %68, %70, %64 : vector<8x2xi1>, vector<8x2xi32>
    %72 = vector.extract_strided_slice %46 {offsets = [4, 0], sizes = [1, 2], strides = [1, 1]} : vector<8x2xf32> to vector<1x2xf32>
    %73 = vector.broadcast %72 : vector<1x2xf32> to vector<8x2xf32>
    %74 = arith.addf %73, %30 : vector<8x2xf32>
    %75 = arith.cmpf ogt, %74, %69 : vector<8x2xf32>
    %76 = arith.select %75, %74, %69 : vector<8x2xi1>, vector<8x2xf32>
    %c4_i32 = arith.constant 4 : i32
    %77 = vector.broadcast %c4_i32 : i32 to vector<8x2xi32>
    %78 = arith.select %75, %77, %71 : vector<8x2xi1>, vector<8x2xi32>
    %79 = vector.extract_strided_slice %46 {offsets = [5, 0], sizes = [1, 2], strides = [1, 1]} : vector<8x2xf32> to vector<1x2xf32>
    %80 = vector.broadcast %79 : vector<1x2xf32> to vector<8x2xf32>
    %81 = arith.addf %80, %33 : vector<8x2xf32>
    %82 = arith.cmpf ogt, %81, %76 : vector<8x2xf32>
    %83 = arith.select %82, %81, %76 : vector<8x2xi1>, vector<8x2xf32>
    %c5_i32 = arith.constant 5 : i32
    %84 = vector.broadcast %c5_i32 : i32 to vector<8x2xi32>
    %85 = arith.select %82, %84, %78 : vector<8x2xi1>, vector<8x2xi32>
    %86 = vector.extract_strided_slice %46 {offsets = [6, 0], sizes = [1, 2], strides = [1, 1]} : vector<8x2xf32> to vector<1x2xf32>
    %87 = vector.broadcast %86 : vector<1x2xf32> to vector<8x2xf32>
    %88 = arith.addf %87, %36 : vector<8x2xf32>
    %89 = arith.cmpf ogt, %88, %83 : vector<8x2xf32>
    %90 = arith.select %89, %88, %83 : vector<8x2xi1>, vector<8x2xf32>
    %c6_i32 = arith.constant 6 : i32
    %91 = vector.broadcast %c6_i32 : i32 to vector<8x2xi32>
    %92 = arith.select %89, %91, %85 : vector<8x2xi1>, vector<8x2xi32>
    %93 = vector.extract_strided_slice %46 {offsets = [7, 0], sizes = [1, 2], strides = [1, 1]} : vector<8x2xf32> to vector<1x2xf32>
    %94 = vector.broadcast %93 : vector<1x2xf32> to vector<8x2xf32>
    %95 = arith.addf %94, %39 : vector<8x2xf32>
    %96 = arith.cmpf ogt, %95, %90 : vector<8x2xf32>
    %97 = arith.select %96, %95, %90 : vector<8x2xi1>, vector<8x2xf32>
    %c7_i32 = arith.constant 7 : i32
    %98 = vector.broadcast %c7_i32 : i32 to vector<8x2xi32>
    %99 = arith.select %96, %98, %92 : vector<8x2xi1>, vector<8x2xi32>
    %c1_i32_19 = arith.constant 1 : i32
    %100 = arith.addi %1, %c1_i32_19 : i32
    %101 = arith.index_cast %100 : i32 to index
    %c0_20 = arith.constant 0 : index
    %c0_21 = arith.constant 0 : index
    %102 = vector.load %arg11[%101, %c0_20, %c0_21] : memref<8x8x2xi32, #tpu.memory_space<vmem>>, vector<1x8x2xi32>
    %103 = vector.shape_cast %102 : vector<1x8x2xi32> to vector<8x2xi32>
    %104 = vector.shape_cast %99 : vector<8x2xi32> to vector<1x8x2xi32>
    tpu.vector_store %arg11[%101, %c0_20, %c0_21], %104 {strides = array<i32>} : memref<8x8x2xi32, #tpu.memory_space<vmem>>, vector<1x8x2xi32>,
    %c0_22 = arith.constant 0 : index
    %c1 = arith.constant 1 : index
    %c0_23 = arith.constant 0 : index
    %105 = vector.load %arg10[%c0_22, %c1, %c0_23] : memref<2x8x8xf32, #tpu.memory_space<vmem>>, vector<2x1x8xf32>
    %106 = vector.shape_cast %105 : vector<2x1x8xf32> to vector<2x8xf32>
    %107 = tpu.transpose %106, [1, 0] : vector<2x8xf32> -> vector<8x2xf32>
    %108 = arith.addf %97, %107 : vector<8x2xf32>
    %109 = vector.extract_strided_slice %108 {offsets = [0, 0], sizes = [1, 2], strides = [1, 1]} : vector<8x2xf32> to vector<1x2xf32>
    %110 = vector.broadcast %109 : vector<1x2xf32> to vector<8x2xf32>
    %111 = arith.addf %110, %18 : vector<8x2xf32>
    %c0_i32_24 = arith.constant 0 : i32
    %112 = vector.broadcast %c0_i32_24 : i32 to vector<8x2xi32>
    %113 = vector.extract_strided_slice %108 {offsets = [1, 0], sizes = [1, 2], strides = [1, 1]} : vector<8x2xf32> to vector<1x2xf32>
    %114 = vector.broadcast %113 : vector<1x2xf32> to vector<8x2xf32>
    %115 = arith.addf %114, %21 : vector<8x2xf32>
    %116 = arith.cmpf ogt, %115, %111 : vector<8x2xf32>
    %117 = arith.select %116, %115, %111 : vector<8x2xi1>, vector<8x2xf32>
    %c1_i32_25 = arith.constant 1 : i32
    %118 = vector.broadcast %c1_i32_25 : i32 to vector<8x2xi32>
    %119 = arith.select %116, %118, %112 : vector<8x2xi1>, vector<8x2xi32>
    %120 = vector.extract_strided_slice %108 {offsets = [2, 0], sizes = [1, 2], strides = [1, 1]} : vector<8x2xf32> to vector<1x2xf32>
    %121 = vector.broadcast %120 : vector<1x2xf32> to vector<8x2xf32>
    %122 = arith.addf %121, %24 : vector<8x2xf32>
    %123 = arith.cmpf ogt, %122, %117 : vector<8x2xf32>
    %124 = arith.select %123, %122, %117 : vector<8x2xi1>, vector<8x2xf32>
    %c2_i32_26 = arith.constant 2 : i32
    %125 = vector.broadcast %c2_i32_26 : i32 to vector<8x2xi32>
    %126 = arith.select %123, %125, %119 : vector<8x2xi1>, vector<8x2xi32>
    %127 = vector.extract_strided_slice %108 {offsets = [3, 0], sizes = [1, 2], strides = [1, 1]} : vector<8x2xf32> to vector<1x2xf32>
    %128 = vector.broadcast %127 : vector<1x2xf32> to vector<8x2xf32>
    %129 = arith.addf %128, %27 : vector<8x2xf32>
    %130 = arith.cmpf ogt, %129, %124 : vector<8x2xf32>
    %131 = arith.select %130, %129, %124 : vector<8x2xi1>, vector<8x2xf32>
    %c3_i32_27 = arith.constant 3 : i32
    %132 = vector.broadcast %c3_i32_27 : i32 to vector<8x2xi32>
    %133 = arith.select %130, %132, %126 : vector<8x2xi1>, vector<8x2xi32>
    %134 = vector.extract_strided_slice %108 {offsets = [4, 0], sizes = [1, 2], strides = [1, 1]} : vector<8x2xf32> to vector<1x2xf32>
    %135 = vector.broadcast %134 : vector<1x2xf32> to vector<8x2xf32>
    %136 = arith.addf %135, %30 : vector<8x2xf32>
    %137 = arith.cmpf ogt, %136, %131 : vector<8x2xf32>
    %138 = arith.select %137, %136, %131 : vector<8x2xi1>, vector<8x2xf32>
    %c4_i32_28 = arith.constant 4 : i32
    %139 = vector.broadcast %c4_i32_28 : i32 to vector<8x2xi32>
    %140 = arith.select %137, %139, %133 : vector<8x2xi1>, vector<8x2xi32>
    %141 = vector.extract_strided_slice %108 {offsets = [5, 0], sizes = [1, 2], strides = [1, 1]} : vector<8x2xf32> to vector<1x2xf32>
    %142 = vector.broadcast %141 : vector<1x2xf32> to vector<8x2xf32>
    %143 = arith.addf %142, %33 : vector<8x2xf32>
    %144 = arith.cmpf ogt, %143, %138 : vector<8x2xf32>
    %145 = arith.select %144, %143, %138 : vector<8x2xi1>, vector<8x2xf32>
    %c5_i32_29 = arith.constant 5 : i32
    %146 = vector.broadcast %c5_i32_29 : i32 to vector<8x2xi32>
    %147 = arith.select %144, %146, %140 : vector<8x2xi1>, vector<8x2xi32>
    %148 = vector.extract_strided_slice %108 {offsets = [6, 0], sizes = [1, 2], strides = [1, 1]} : vector<8x2xf32> to vector<1x2xf32>
    %149 = vector.broadcast %148 : vector<1x2xf32> to vector<8x2xf32>
    %150 = arith.addf %149, %36 : vector<8x2xf32>
    %151 = arith.cmpf ogt, %150, %145 : vector<8x2xf32>
    %152 = arith.select %151, %150, %145 : vector<8x2xi1>, vector<8x2xf32>
    %c6_i32_30 = arith.constant 6 : i32
    %153 = vector.broadcast %c6_i32_30 : i32 to vector<8x2xi32>
    %154 = arith.select %151, %153, %147 : vector<8x2xi1>, vector<8x2xi32>
    %155 = vector.extract_strided_slice %108 {offsets = [7, 0], sizes = [1, 2], strides = [1, 1]} : vector<8x2xf32> to vector<1x2xf32>
    %156 = vector.broadcast %155 : vector<1x2xf32> to vector<8x2xf32>
    %157 = arith.addf %156, %39 : vector<8x2xf32>
    %158 = arith.cmpf ogt, %157, %152 : vector<8x2xf32>
    %159 = arith.select %158, %157, %152 : vector<8x2xi1>, vector<8x2xf32>
    %c7_i32_31 = arith.constant 7 : i32
    %160 = vector.broadcast %c7_i32_31 : i32 to vector<8x2xi32>
    %161 = arith.select %158, %160, %154 : vector<8x2xi1>, vector<8x2xi32>
    %c2_i32_32 = arith.constant 2 : i32
    %162 = arith.addi %1, %c2_i32_32 : i32
    %163 = arith.index_cast %162 : i32 to index
    %c0_33 = arith.constant 0 : index
    %c0_34 = arith.constant 0 : index
    %164 = vector.load %arg11[%163, %c0_33, %c0_34] : memref<8x8x2xi32, #tpu.memory_space<vmem>>, vector<1x8x2xi32>
    %165 = vector.shape_cast %164 : vector<1x8x2xi32> to vector<8x2xi32>
    %166 = vector.shape_cast %161 : vector<8x2xi32> to vector<1x8x2xi32>
    tpu.vector_store %arg11[%163, %c0_33, %c0_34], %166 {strides = array<i32>} : memref<8x8x2xi32, #tpu.memory_space<vmem>>, vector<1x8x2xi32>,
    %c0_35 = arith.constant 0 : index
    %c2 = arith.constant 2 : index
    %c0_36 = arith.constant 0 : index
    %167 = vector.load %arg10[%c0_35, %c2, %c0_36] : memref<2x8x8xf32, #tpu.memory_space<vmem>>, vector<2x1x8xf32>
    %168 = vector.shape_cast %167 : vector<2x1x8xf32> to vector<2x8xf32>
    %169 = tpu.transpose %168, [1, 0] : vector<2x8xf32> -> vector<8x2xf32>
    %170 = arith.addf %159, %169 : vector<8x2xf32>
    %171 = vector.extract_strided_slice %170 {offsets = [0, 0], sizes = [1, 2], strides = [1, 1]} : vector<8x2xf32> to vector<1x2xf32>
    %172 = vector.broadcast %171 : vector<1x2xf32> to vector<8x2xf32>
    %173 = arith.addf %172, %18 : vector<8x2xf32>
    %c0_i32_37 = arith.constant 0 : i32
    %174 = vector.broadcast %c0_i32_37 : i32 to vector<8x2xi32>
    %175 = vector.extract_strided_slice %170 {offsets = [1, 0], sizes = [1, 2], strides = [1, 1]} : vector<8x2xf32> to vector<1x2xf32>
    %176 = vector.broadcast %175 : vector<1x2xf32> to vector<8x2xf32>
    %177 = arith.addf %176, %21 : vector<8x2xf32>
    %178 = arith.cmpf ogt, %177, %173 : vector<8x2xf32>
    %179 = arith.select %178, %177, %173 : vector<8x2xi1>, vector<8x2xf32>
    %c1_i32_38 = arith.constant 1 : i32
    %180 = vector.broadcast %c1_i32_38 : i32 to vector<8x2xi32>
    %181 = arith.select %178, %180, %174 : vector<8x2xi1>, vector<8x2xi32>
    %182 = vector.extract_strided_slice %170 {offsets = [2, 0], sizes = [1, 2], strides = [1, 1]} : vector<8x2xf32> to vector<1x2xf32>
    %183 = vector.broadcast %182 : vector<1x2xf32> to vector<8x2xf32>
    %184 = arith.addf %183, %24 : vector<8x2xf32>
    %185 = arith.cmpf ogt, %184, %179 : vector<8x2xf32>
    %186 = arith.select %185, %184, %179 : vector<8x2xi1>, vector<8x2xf32>
    %c2_i32_39 = arith.constant 2 : i32
    %187 = vector.broadcast %c2_i32_39 : i32 to vector<8x2xi32>
    %188 = arith.select %185, %187, %181 : vector<8x2xi1>, vector<8x2xi32>
    %189 = vector.extract_strided_slice %170 {offsets = [3, 0], sizes = [1, 2], strides = [1, 1]} : vector<8x2xf32> to vector<1x2xf32>
    %190 = vector.broadcast %189 : vector<1x2xf32> to vector<8x2xf32>
    %191 = arith.addf %190, %27 : vector<8x2xf32>
    %192 = arith.cmpf ogt, %191, %186 : vector<8x2xf32>
    %193 = arith.select %192, %191, %186 : vector<8x2xi1>, vector<8x2xf32>
    %c3_i32_40 = arith.constant 3 : i32
    %194 = vector.broadcast %c3_i32_40 : i32 to vector<8x2xi32>
    %195 = arith.select %192, %194, %188 : vector<8x2xi1>, vector<8x2xi32>
    %196 = vector.extract_strided_slice %170 {offsets = [4, 0], sizes = [1, 2], strides = [1, 1]} : vector<8x2xf32> to vector<1x2xf32>
    %197 = vector.broadcast %196 : vector<1x2xf32> to vector<8x2xf32>
    %198 = arith.addf %197, %30 : vector<8x2xf32>
    %199 = arith.cmpf ogt, %198, %193 : vector<8x2xf32>
    %200 = arith.select %199, %198, %193 : vector<8x2xi1>, vector<8x2xf32>
    %c4_i32_41 = arith.constant 4 : i32
    %201 = vector.broadcast %c4_i32_41 : i32 to vector<8x2xi32>
    %202 = arith.select %199, %201, %195 : vector<8x2xi1>, vector<8x2xi32>
    %203 = vector.extract_strided_slice %170 {offsets = [5, 0], sizes = [1, 2], strides = [1, 1]} : vector<8x2xf32> to vector<1x2xf32>
    %204 = vector.broadcast %203 : vector<1x2xf32> to vector<8x2xf32>
    %205 = arith.addf %204, %33 : vector<8x2xf32>
    %206 = arith.cmpf ogt, %205, %200 : vector<8x2xf32>
    %207 = arith.select %206, %205, %200 : vector<8x2xi1>, vector<8x2xf32>
    %c5_i32_42 = arith.constant 5 : i32
    %208 = vector.broadcast %c5_i32_42 : i32 to vector<8x2xi32>
    %209 = arith.select %206, %208, %202 : vector<8x2xi1>, vector<8x2xi32>
    %210 = vector.extract_strided_slice %170 {offsets = [6, 0], sizes = [1, 2], strides = [1, 1]} : vector<8x2xf32> to vector<1x2xf32>
    %211 = vector.broadcast %210 : vector<1x2xf32> to vector<8x2xf32>
    %212 = arith.addf %211, %36 : vector<8x2xf32>
    %213 = arith.cmpf ogt, %212, %207 : vector<8x2xf32>
    %214 = arith.select %213, %212, %207 : vector<8x2xi1>, vector<8x2xf32>
    %c6_i32_43 = arith.constant 6 : i32
    %215 = vector.broadcast %c6_i32_43 : i32 to vector<8x2xi32>
    %216 = arith.select %213, %215, %209 : vector<8x2xi1>, vector<8x2xi32>
    %217 = vector.extract_strided_slice %170 {offsets = [7, 0], sizes = [1, 2], strides = [1, 1]} : vector<8x2xf32> to vector<1x2xf32>
    %218 = vector.broadcast %217 : vector<1x2xf32> to vector<8x2xf32>
    %219 = arith.addf %218, %39 : vector<8x2xf32>
    %220 = arith.cmpf ogt, %219, %214 : vector<8x2xf32>
    %221 = arith.select %220, %219, %214 : vector<8x2xi1>, vector<8x2xf32>
    %c7_i32_44 = arith.constant 7 : i32
    %222 = vector.broadcast %c7_i32_44 : i32 to vector<8x2xi32>
    %223 = arith.select %220, %222, %216 : vector<8x2xi1>, vector<8x2xi32>
    %c3_i32_45 = arith.constant 3 : i32
    %224 = arith.addi %1, %c3_i32_45 : i32
    %225 = arith.index_cast %224 : i32 to index
    %c0_46 = arith.constant 0 : index
    %c0_47 = arith.constant 0 : index
    %226 = vector.load %arg11[%225, %c0_46, %c0_47] : memref<8x8x2xi32, #tpu.memory_space<vmem>>, vector<1x8x2xi32>
    %227 = vector.shape_cast %226 : vector<1x8x2xi32> to vector<8x2xi32>
    %228 = vector.shape_cast %223 : vector<8x2xi32> to vector<1x8x2xi32>
    tpu.vector_store %arg11[%225, %c0_46, %c0_47], %228 {strides = array<i32>} : memref<8x8x2xi32, #tpu.memory_space<vmem>>, vector<1x8x2xi32>,
    %c0_48 = arith.constant 0 : index
    %c3 = arith.constant 3 : index
    %c0_49 = arith.constant 0 : index
    %229 = vector.load %arg10[%c0_48, %c3, %c0_49] : memref<2x8x8xf32, #tpu.memory_space<vmem>>, vector<2x1x8xf32>
    %230 = vector.shape_cast %229 : vector<2x1x8xf32> to vector<2x8xf32>
    %231 = tpu.transpose %230, [1, 0] : vector<2x8xf32> -> vector<8x2xf32>
    %232 = arith.addf %221, %231 : vector<8x2xf32>
    %233 = vector.extract_strided_slice %232 {offsets = [0, 0], sizes = [1, 2], strides = [1, 1]} : vector<8x2xf32> to vector<1x2xf32>
    %234 = vector.broadcast %233 : vector<1x2xf32> to vector<8x2xf32>
    %235 = arith.addf %234, %18 : vector<8x2xf32>
    %c0_i32_50 = arith.constant 0 : i32
    %236 = vector.broadcast %c0_i32_50 : i32 to vector<8x2xi32>
    %237 = vector.extract_strided_slice %232 {offsets = [1, 0], sizes = [1, 2], strides = [1, 1]} : vector<8x2xf32> to vector<1x2xf32>
    %238 = vector.broadcast %237 : vector<1x2xf32> to vector<8x2xf32>
    %239 = arith.addf %238, %21 : vector<8x2xf32>
    %240 = arith.cmpf ogt, %239, %235 : vector<8x2xf32>
    %241 = arith.select %240, %239, %235 : vector<8x2xi1>, vector<8x2xf32>
    %c1_i32_51 = arith.constant 1 : i32
    %242 = vector.broadcast %c1_i32_51 : i32 to vector<8x2xi32>
    %243 = arith.select %240, %242, %236 : vector<8x2xi1>, vector<8x2xi32>
    %244 = vector.extract_strided_slice %232 {offsets = [2, 0], sizes = [1, 2], strides = [1, 1]} : vector<8x2xf32> to vector<1x2xf32>
    %245 = vector.broadcast %244 : vector<1x2xf32> to vector<8x2xf32>
    %246 = arith.addf %245, %24 : vector<8x2xf32>
    %247 = arith.cmpf ogt, %246, %241 : vector<8x2xf32>
    %248 = arith.select %247, %246, %241 : vector<8x2xi1>, vector<8x2xf32>
    %c2_i32_52 = arith.constant 2 : i32
    %249 = vector.broadcast %c2_i32_52 : i32 to vector<8x2xi32>
    %250 = arith.select %247, %249, %243 : vector<8x2xi1>, vector<8x2xi32>
    %251 = vector.extract_strided_slice %232 {offsets = [3, 0], sizes = [1, 2], strides = [1, 1]} : vector<8x2xf32> to vector<1x2xf32>
    %252 = vector.broadcast %251 : vector<1x2xf32> to vector<8x2xf32>
    %253 = arith.addf %252, %27 : vector<8x2xf32>
    %254 = arith.cmpf ogt, %253, %248 : vector<8x2xf32>
    %255 = arith.select %254, %253, %248 : vector<8x2xi1>, vector<8x2xf32>
    %c3_i32_53 = arith.constant 3 : i32
    %256 = vector.broadcast %c3_i32_53 : i32 to vector<8x2xi32>
    %257 = arith.select %254, %256, %250 : vector<8x2xi1>, vector<8x2xi32>
    %258 = vector.extract_strided_slice %232 {offsets = [4, 0], sizes = [1, 2], strides = [1, 1]} : vector<8x2xf32> to vector<1x2xf32>
    %259 = vector.broadcast %258 : vector<1x2xf32> to vector<8x2xf32>
    %260 = arith.addf %259, %30 : vector<8x2xf32>
    %261 = arith.cmpf ogt, %260, %255 : vector<8x2xf32>
    %262 = arith.select %261, %260, %255 : vector<8x2xi1>, vector<8x2xf32>
    %c4_i32_54 = arith.constant 4 : i32
    %263 = vector.broadcast %c4_i32_54 : i32 to vector<8x2xi32>
    %264 = arith.select %261, %263, %257 : vector<8x2xi1>, vector<8x2xi32>
    %265 = vector.extract_strided_slice %232 {offsets = [5, 0], sizes = [1, 2], strides = [1, 1]} : vector<8x2xf32> to vector<1x2xf32>
    %266 = vector.broadcast %265 : vector<1x2xf32> to vector<8x2xf32>
    %267 = arith.addf %266, %33 : vector<8x2xf32>
    %268 = arith.cmpf ogt, %267, %262 : vector<8x2xf32>
    %269 = arith.select %268, %267, %262 : vector<8x2xi1>, vector<8x2xf32>
    %c5_i32_55 = arith.constant 5 : i32
    %270 = vector.broadcast %c5_i32_55 : i32 to vector<8x2xi32>
    %271 = arith.select %268, %270, %264 : vector<8x2xi1>, vector<8x2xi32>
    %272 = vector.extract_strided_slice %232 {offsets = [6, 0], sizes = [1, 2], strides = [1, 1]} : vector<8x2xf32> to vector<1x2xf32>
    %273 = vector.broadcast %272 : vector<1x2xf32> to vector<8x2xf32>
    %274 = arith.addf %273, %36 : vector<8x2xf32>
    %275 = arith.cmpf ogt, %274, %269 : vector<8x2xf32>
    %276 = arith.select %275, %274, %269 : vector<8x2xi1>, vector<8x2xf32>
    %c6_i32_56 = arith.constant 6 : i32
    %277 = vector.broadcast %c6_i32_56 : i32 to vector<8x2xi32>
    %278 = arith.select %275, %277, %271 : vector<8x2xi1>, vector<8x2xi32>
    %279 = vector.extract_strided_slice %232 {offsets = [7, 0], sizes = [1, 2], strides = [1, 1]} : vector<8x2xf32> to vector<1x2xf32>
    %280 = vector.broadcast %279 : vector<1x2xf32> to vector<8x2xf32>
    %281 = arith.addf %280, %39 : vector<8x2xf32>
    %282 = arith.cmpf ogt, %281, %276 : vector<8x2xf32>
    %283 = arith.select %282, %281, %276 : vector<8x2xi1>, vector<8x2xf32>
    %c7_i32_57 = arith.constant 7 : i32
    %284 = vector.broadcast %c7_i32_57 : i32 to vector<8x2xi32>
    %285 = arith.select %282, %284, %278 : vector<8x2xi1>, vector<8x2xi32>
    %c4_i32_58 = arith.constant 4 : i32
    %286 = arith.addi %1, %c4_i32_58 : i32
    %287 = arith.index_cast %286 : i32 to index
    %c0_59 = arith.constant 0 : index
    %c0_60 = arith.constant 0 : index
    %288 = vector.load %arg11[%287, %c0_59, %c0_60] : memref<8x8x2xi32, #tpu.memory_space<vmem>>, vector<1x8x2xi32>
    %289 = vector.shape_cast %288 : vector<1x8x2xi32> to vector<8x2xi32>
    %290 = vector.shape_cast %285 : vector<8x2xi32> to vector<1x8x2xi32>
    tpu.vector_store %arg11[%287, %c0_59, %c0_60], %290 {strides = array<i32>} : memref<8x8x2xi32, #tpu.memory_space<vmem>>, vector<1x8x2xi32>,
    %c0_61 = arith.constant 0 : index
    %c4 = arith.constant 4 : index
    %c0_62 = arith.constant 0 : index
    %291 = vector.load %arg10[%c0_61, %c4, %c0_62] : memref<2x8x8xf32, #tpu.memory_space<vmem>>, vector<2x1x8xf32>
    %292 = vector.shape_cast %291 : vector<2x1x8xf32> to vector<2x8xf32>
    %293 = tpu.transpose %292, [1, 0] : vector<2x8xf32> -> vector<8x2xf32>
    %294 = arith.addf %283, %293 : vector<8x2xf32>
    %295 = vector.extract_strided_slice %294 {offsets = [0, 0], sizes = [1, 2], strides = [1, 1]} : vector<8x2xf32> to vector<1x2xf32>
    %296 = vector.broadcast %295 : vector<1x2xf32> to vector<8x2xf32>
    %297 = arith.addf %296, %18 : vector<8x2xf32>
    %c0_i32_63 = arith.constant 0 : i32
    %298 = vector.broadcast %c0_i32_63 : i32 to vector<8x2xi32>
    %299 = vector.extract_strided_slice %294 {offsets = [1, 0], sizes = [1, 2], strides = [1, 1]} : vector<8x2xf32> to vector<1x2xf32>
    %300 = vector.broadcast %299 : vector<1x2xf32> to vector<8x2xf32>
    %301 = arith.addf %300, %21 : vector<8x2xf32>
    %302 = arith.cmpf ogt, %301, %297 : vector<8x2xf32>
    %303 = arith.select %302, %301, %297 : vector<8x2xi1>, vector<8x2xf32>
    %c1_i32_64 = arith.constant 1 : i32
    %304 = vector.broadcast %c1_i32_64 : i32 to vector<8x2xi32>
    %305 = arith.select %302, %304, %298 : vector<8x2xi1>, vector<8x2xi32>
    %306 = vector.extract_strided_slice %294 {offsets = [2, 0], sizes = [1, 2], strides = [1, 1]} : vector<8x2xf32> to vector<1x2xf32>
    %307 = vector.broadcast %306 : vector<1x2xf32> to vector<8x2xf32>
    %308 = arith.addf %307, %24 : vector<8x2xf32>
    %309 = arith.cmpf ogt, %308, %303 : vector<8x2xf32>
    %310 = arith.select %309, %308, %303 : vector<8x2xi1>, vector<8x2xf32>
    %c2_i32_65 = arith.constant 2 : i32
    %311 = vector.broadcast %c2_i32_65 : i32 to vector<8x2xi32>
    %312 = arith.select %309, %311, %305 : vector<8x2xi1>, vector<8x2xi32>
    %313 = vector.extract_strided_slice %294 {offsets = [3, 0], sizes = [1, 2], strides = [1, 1]} : vector<8x2xf32> to vector<1x2xf32>
    %314 = vector.broadcast %313 : vector<1x2xf32> to vector<8x2xf32>
    %315 = arith.addf %314, %27 : vector<8x2xf32>
    %316 = arith.cmpf ogt, %315, %310 : vector<8x2xf32>
    %317 = arith.select %316, %315, %310 : vector<8x2xi1>, vector<8x2xf32>
    %c3_i32_66 = arith.constant 3 : i32
    %318 = vector.broadcast %c3_i32_66 : i32 to vector<8x2xi32>
    %319 = arith.select %316, %318, %312 : vector<8x2xi1>, vector<8x2xi32>
    %320 = vector.extract_strided_slice %294 {offsets = [4, 0], sizes = [1, 2], strides = [1, 1]} : vector<8x2xf32> to vector<1x2xf32>
    %321 = vector.broadcast %320 : vector<1x2xf32> to vector<8x2xf32>
    %322 = arith.addf %321, %30 : vector<8x2xf32>
    %323 = arith.cmpf ogt, %322, %317 : vector<8x2xf32>
    %324 = arith.select %323, %322, %317 : vector<8x2xi1>, vector<8x2xf32>
    %c4_i32_67 = arith.constant 4 : i32
    %325 = vector.broadcast %c4_i32_67 : i32 to vector<8x2xi32>
    %326 = arith.select %323, %325, %319 : vector<8x2xi1>, vector<8x2xi32>
    %327 = vector.extract_strided_slice %294 {offsets = [5, 0], sizes = [1, 2], strides = [1, 1]} : vector<8x2xf32> to vector<1x2xf32>
    %328 = vector.broadcast %327 : vector<1x2xf32> to vector<8x2xf32>
    %329 = arith.addf %328, %33 : vector<8x2xf32>
    %330 = arith.cmpf ogt, %329, %324 : vector<8x2xf32>
    %331 = arith.select %330, %329, %324 : vector<8x2xi1>, vector<8x2xf32>
    %c5_i32_68 = arith.constant 5 : i32
    %332 = vector.broadcast %c5_i32_68 : i32 to vector<8x2xi32>
    %333 = arith.select %330, %332, %326 : vector<8x2xi1>, vector<8x2xi32>
    %334 = vector.extract_strided_slice %294 {offsets = [6, 0], sizes = [1, 2], strides = [1, 1]} : vector<8x2xf32> to vector<1x2xf32>
    %335 = vector.broadcast %334 : vector<1x2xf32> to vector<8x2xf32>
    %336 = arith.addf %335, %36 : vector<8x2xf32>
    %337 = arith.cmpf ogt, %336, %331 : vector<8x2xf32>
    %338 = arith.select %337, %336, %331 : vector<8x2xi1>, vector<8x2xf32>
    %c6_i32_69 = arith.constant 6 : i32
    %339 = vector.broadcast %c6_i32_69 : i32 to vector<8x2xi32>
    %340 = arith.select %337, %339, %333 : vector<8x2xi1>, vector<8x2xi32>
    %341 = vector.extract_strided_slice %294 {offsets = [7, 0], sizes = [1, 2], strides = [1, 1]} : vector<8x2xf32> to vector<1x2xf32>
    %342 = vector.broadcast %341 : vector<1x2xf32> to vector<8x2xf32>
    %343 = arith.addf %342, %39 : vector<8x2xf32>
    %344 = arith.cmpf ogt, %343, %338 : vector<8x2xf32>
    %345 = arith.select %344, %343, %338 : vector<8x2xi1>, vector<8x2xf32>
    %c7_i32_70 = arith.constant 7 : i32
    %346 = vector.broadcast %c7_i32_70 : i32 to vector<8x2xi32>
    %347 = arith.select %344, %346, %340 : vector<8x2xi1>, vector<8x2xi32>
    %c5_i32_71 = arith.constant 5 : i32
    %348 = arith.addi %1, %c5_i32_71 : i32
    %349 = arith.index_cast %348 : i32 to index
    %c0_72 = arith.constant 0 : index
    %c0_73 = arith.constant 0 : index
    %350 = vector.load %arg11[%349, %c0_72, %c0_73] : memref<8x8x2xi32, #tpu.memory_space<vmem>>, vector<1x8x2xi32>
    %351 = vector.shape_cast %350 : vector<1x8x2xi32> to vector<8x2xi32>
    %352 = vector.shape_cast %347 : vector<8x2xi32> to vector<1x8x2xi32>
    tpu.vector_store %arg11[%349, %c0_72, %c0_73], %352 {strides = array<i32>} : memref<8x8x2xi32, #tpu.memory_space<vmem>>, vector<1x8x2xi32>,
    %c0_74 = arith.constant 0 : index
    %c5 = arith.constant 5 : index
    %c0_75 = arith.constant 0 : index
    %353 = vector.load %arg10[%c0_74, %c5, %c0_75] : memref<2x8x8xf32, #tpu.memory_space<vmem>>, vector<2x1x8xf32>
    %354 = vector.shape_cast %353 : vector<2x1x8xf32> to vector<2x8xf32>
    %355 = tpu.transpose %354, [1, 0] : vector<2x8xf32> -> vector<8x2xf32>
    %356 = arith.addf %345, %355 : vector<8x2xf32>
    %357 = vector.extract_strided_slice %356 {offsets = [0, 0], sizes = [1, 2], strides = [1, 1]} : vector<8x2xf32> to vector<1x2xf32>
    %358 = vector.broadcast %357 : vector<1x2xf32> to vector<8x2xf32>
    %359 = arith.addf %358, %18 : vector<8x2xf32>
    %c0_i32_76 = arith.constant 0 : i32
    %360 = vector.broadcast %c0_i32_76 : i32 to vector<8x2xi32>
    %361 = vector.extract_strided_slice %356 {offsets = [1, 0], sizes = [1, 2], strides = [1, 1]} : vector<8x2xf32> to vector<1x2xf32>
    %362 = vector.broadcast %361 : vector<1x2xf32> to vector<8x2xf32>
    %363 = arith.addf %362, %21 : vector<8x2xf32>
    %364 = arith.cmpf ogt, %363, %359 : vector<8x2xf32>
    %365 = arith.select %364, %363, %359 : vector<8x2xi1>, vector<8x2xf32>
    %c1_i32_77 = arith.constant 1 : i32
    %366 = vector.broadcast %c1_i32_77 : i32 to vector<8x2xi32>
    %367 = arith.select %364, %366, %360 : vector<8x2xi1>, vector<8x2xi32>
    %368 = vector.extract_strided_slice %356 {offsets = [2, 0], sizes = [1, 2], strides = [1, 1]} : vector<8x2xf32> to vector<1x2xf32>
    %369 = vector.broadcast %368 : vector<1x2xf32> to vector<8x2xf32>
    %370 = arith.addf %369, %24 : vector<8x2xf32>
    %371 = arith.cmpf ogt, %370, %365 : vector<8x2xf32>
    %372 = arith.select %371, %370, %365 : vector<8x2xi1>, vector<8x2xf32>
    %c2_i32_78 = arith.constant 2 : i32
    %373 = vector.broadcast %c2_i32_78 : i32 to vector<8x2xi32>
    %374 = arith.select %371, %373, %367 : vector<8x2xi1>, vector<8x2xi32>
    %375 = vector.extract_strided_slice %356 {offsets = [3, 0], sizes = [1, 2], strides = [1, 1]} : vector<8x2xf32> to vector<1x2xf32>
    %376 = vector.broadcast %375 : vector<1x2xf32> to vector<8x2xf32>
    %377 = arith.addf %376, %27 : vector<8x2xf32>
    %378 = arith.cmpf ogt, %377, %372 : vector<8x2xf32>
    %379 = arith.select %378, %377, %372 : vector<8x2xi1>, vector<8x2xf32>
    %c3_i32_79 = arith.constant 3 : i32
    %380 = vector.broadcast %c3_i32_79 : i32 to vector<8x2xi32>
    %381 = arith.select %378, %380, %374 : vector<8x2xi1>, vector<8x2xi32>
    %382 = vector.extract_strided_slice %356 {offsets = [4, 0], sizes = [1, 2], strides = [1, 1]} : vector<8x2xf32> to vector<1x2xf32>
    %383 = vector.broadcast %382 : vector<1x2xf32> to vector<8x2xf32>
    %384 = arith.addf %383, %30 : vector<8x2xf32>
    %385 = arith.cmpf ogt, %384, %379 : vector<8x2xf32>
    %386 = arith.select %385, %384, %379 : vector<8x2xi1>, vector<8x2xf32>
    %c4_i32_80 = arith.constant 4 : i32
    %387 = vector.broadcast %c4_i32_80 : i32 to vector<8x2xi32>
    %388 = arith.select %385, %387, %381 : vector<8x2xi1>, vector<8x2xi32>
    %389 = vector.extract_strided_slice %356 {offsets = [5, 0], sizes = [1, 2], strides = [1, 1]} : vector<8x2xf32> to vector<1x2xf32>
    %390 = vector.broadcast %389 : vector<1x2xf32> to vector<8x2xf32>
    %391 = arith.addf %390, %33 : vector<8x2xf32>
    %392 = arith.cmpf ogt, %391, %386 : vector<8x2xf32>
    %393 = arith.select %392, %391, %386 : vector<8x2xi1>, vector<8x2xf32>
    %c5_i32_81 = arith.constant 5 : i32
    %394 = vector.broadcast %c5_i32_81 : i32 to vector<8x2xi32>
    %395 = arith.select %392, %394, %388 : vector<8x2xi1>, vector<8x2xi32>
    %396 = vector.extract_strided_slice %356 {offsets = [6, 0], sizes = [1, 2], strides = [1, 1]} : vector<8x2xf32> to vector<1x2xf32>
    %397 = vector.broadcast %396 : vector<1x2xf32> to vector<8x2xf32>
    %398 = arith.addf %397, %36 : vector<8x2xf32>
    %399 = arith.cmpf ogt, %398, %393 : vector<8x2xf32>
    %400 = arith.select %399, %398, %393 : vector<8x2xi1>, vector<8x2xf32>
    %c6_i32_82 = arith.constant 6 : i32
    %401 = vector.broadcast %c6_i32_82 : i32 to vector<8x2xi32>
    %402 = arith.select %399, %401, %395 : vector<8x2xi1>, vector<8x2xi32>
    %403 = vector.extract_strided_slice %356 {offsets = [7, 0], sizes = [1, 2], strides = [1, 1]} : vector<8x2xf32> to vector<1x2xf32>
    %404 = vector.broadcast %403 : vector<1x2xf32> to vector<8x2xf32>
    %405 = arith.addf %404, %39 : vector<8x2xf32>
    %406 = arith.cmpf ogt, %405, %400 : vector<8x2xf32>
    %407 = arith.select %406, %405, %400 : vector<8x2xi1>, vector<8x2xf32>
    %c7_i32_83 = arith.constant 7 : i32
    %408 = vector.broadcast %c7_i32_83 : i32 to vector<8x2xi32>
    %409 = arith.select %406, %408, %402 : vector<8x2xi1>, vector<8x2xi32>
    %c6_i32_84 = arith.constant 6 : i32
    %410 = arith.addi %1, %c6_i32_84 : i32
    %411 = arith.index_cast %410 : i32 to index
    %c0_85 = arith.constant 0 : index
    %c0_86 = arith.constant 0 : index
    %412 = vector.load %arg11[%411, %c0_85, %c0_86] : memref<8x8x2xi32, #tpu.memory_space<vmem>>, vector<1x8x2xi32>
    %413 = vector.shape_cast %412 : vector<1x8x2xi32> to vector<8x2xi32>
    %414 = vector.shape_cast %409 : vector<8x2xi32> to vector<1x8x2xi32>
    tpu.vector_store %arg11[%411, %c0_85, %c0_86], %414 {strides = array<i32>} : memref<8x8x2xi32, #tpu.memory_space<vmem>>, vector<1x8x2xi32>,
    %c0_87 = arith.constant 0 : index
    %c6 = arith.constant 6 : index
    %c0_88 = arith.constant 0 : index
    %415 = vector.load %arg10[%c0_87, %c6, %c0_88] : memref<2x8x8xf32, #tpu.memory_space<vmem>>, vector<2x1x8xf32>
    %416 = vector.shape_cast %415 : vector<2x1x8xf32> to vector<2x8xf32>
    %417 = tpu.transpose %416, [1, 0] : vector<2x8xf32> -> vector<8x2xf32>
    %418 = arith.addf %407, %417 : vector<8x2xf32>
    %419 = vector.extract_strided_slice %418 {offsets = [0, 0], sizes = [1, 2], strides = [1, 1]} : vector<8x2xf32> to vector<1x2xf32>
    %420 = vector.broadcast %419 : vector<1x2xf32> to vector<8x2xf32>
    %421 = arith.addf %420, %18 : vector<8x2xf32>
    %c0_i32_89 = arith.constant 0 : i32
    %422 = vector.broadcast %c0_i32_89 : i32 to vector<8x2xi32>
    %423 = vector.extract_strided_slice %418 {offsets = [1, 0], sizes = [1, 2], strides = [1, 1]} : vector<8x2xf32> to vector<1x2xf32>
    %424 = vector.broadcast %423 : vector<1x2xf32> to vector<8x2xf32>
    %425 = arith.addf %424, %21 : vector<8x2xf32>
    %426 = arith.cmpf ogt, %425, %421 : vector<8x2xf32>
    %427 = arith.select %426, %425, %421 : vector<8x2xi1>, vector<8x2xf32>
    %c1_i32_90 = arith.constant 1 : i32
    %428 = vector.broadcast %c1_i32_90 : i32 to vector<8x2xi32>
    %429 = arith.select %426, %428, %422 : vector<8x2xi1>, vector<8x2xi32>
    %430 = vector.extract_strided_slice %418 {offsets = [2, 0], sizes = [1, 2], strides = [1, 1]} : vector<8x2xf32> to vector<1x2xf32>
    %431 = vector.broadcast %430 : vector<1x2xf32> to vector<8x2xf32>
    %432 = arith.addf %431, %24 : vector<8x2xf32>
    %433 = arith.cmpf ogt, %432, %427 : vector<8x2xf32>
    %434 = arith.select %433, %432, %427 : vector<8x2xi1>, vector<8x2xf32>
    %c2_i32_91 = arith.constant 2 : i32
    %435 = vector.broadcast %c2_i32_91 : i32 to vector<8x2xi32>
    %436 = arith.select %433, %435, %429 : vector<8x2xi1>, vector<8x2xi32>
    %437 = vector.extract_strided_slice %418 {offsets = [3, 0], sizes = [1, 2], strides = [1, 1]} : vector<8x2xf32> to vector<1x2xf32>
    %438 = vector.broadcast %437 : vector<1x2xf32> to vector<8x2xf32>
    %439 = arith.addf %438, %27 : vector<8x2xf32>
    %440 = arith.cmpf ogt, %439, %434 : vector<8x2xf32>
    %441 = arith.select %440, %439, %434 : vector<8x2xi1>, vector<8x2xf32>
    %c3_i32_92 = arith.constant 3 : i32
    %442 = vector.broadcast %c3_i32_92 : i32 to vector<8x2xi32>
    %443 = arith.select %440, %442, %436 : vector<8x2xi1>, vector<8x2xi32>
    %444 = vector.extract_strided_slice %418 {offsets = [4, 0], sizes = [1, 2], strides = [1, 1]} : vector<8x2xf32> to vector<1x2xf32>
    %445 = vector.broadcast %444 : vector<1x2xf32> to vector<8x2xf32>
    %446 = arith.addf %445, %30 : vector<8x2xf32>
    %447 = arith.cmpf ogt, %446, %441 : vector<8x2xf32>
    %448 = arith.select %447, %446, %441 : vector<8x2xi1>, vector<8x2xf32>
    %c4_i32_93 = arith.constant 4 : i32
    %449 = vector.broadcast %c4_i32_93 : i32 to vector<8x2xi32>
    %450 = arith.select %447, %449, %443 : vector<8x2xi1>, vector<8x2xi32>
    %451 = vector.extract_strided_slice %418 {offsets = [5, 0], sizes = [1, 2], strides = [1, 1]} : vector<8x2xf32> to vector<1x2xf32>
    %452 = vector.broadcast %451 : vector<1x2xf32> to vector<8x2xf32>
    %453 = arith.addf %452, %33 : vector<8x2xf32>
    %454 = arith.cmpf ogt, %453, %448 : vector<8x2xf32>
    %455 = arith.select %454, %453, %448 : vector<8x2xi1>, vector<8x2xf32>
    %c5_i32_94 = arith.constant 5 : i32
    %456 = vector.broadcast %c5_i32_94 : i32 to vector<8x2xi32>
    %457 = arith.select %454, %456, %450 : vector<8x2xi1>, vector<8x2xi32>
    %458 = vector.extract_strided_slice %418 {offsets = [6, 0], sizes = [1, 2], strides = [1, 1]} : vector<8x2xf32> to vector<1x2xf32>
    %459 = vector.broadcast %458 : vector<1x2xf32> to vector<8x2xf32>
    %460 = arith.addf %459, %36 : vector<8x2xf32>
    %461 = arith.cmpf ogt, %460, %455 : vector<8x2xf32>
    %462 = arith.select %461, %460, %455 : vector<8x2xi1>, vector<8x2xf32>
    %c6_i32_95 = arith.constant 6 : i32
    %463 = vector.broadcast %c6_i32_95 : i32 to vector<8x2xi32>
    %464 = arith.select %461, %463, %457 : vector<8x2xi1>, vector<8x2xi32>
    %465 = vector.extract_strided_slice %418 {offsets = [7, 0], sizes = [1, 2], strides = [1, 1]} : vector<8x2xf32> to vector<1x2xf32>
    %466 = vector.broadcast %465 : vector<1x2xf32> to vector<8x2xf32>
    %467 = arith.addf %466, %39 : vector<8x2xf32>
    %468 = arith.cmpf ogt, %467, %462 : vector<8x2xf32>
    %469 = arith.select %468, %467, %462 : vector<8x2xi1>, vector<8x2xf32>
    %c7_i32_96 = arith.constant 7 : i32
    %470 = vector.broadcast %c7_i32_96 : i32 to vector<8x2xi32>
    %471 = arith.select %468, %470, %464 : vector<8x2xi1>, vector<8x2xi32>
    %c7_i32_97 = arith.constant 7 : i32
    %472 = arith.addi %1, %c7_i32_97 : i32
    %473 = arith.index_cast %472 : i32 to index
    %c0_98 = arith.constant 0 : index
    %c0_99 = arith.constant 0 : index
    %474 = vector.load %arg11[%473, %c0_98, %c0_99] : memref<8x8x2xi32, #tpu.memory_space<vmem>>, vector<1x8x2xi32>
    %475 = vector.shape_cast %474 : vector<1x8x2xi32> to vector<8x2xi32>
    %476 = vector.shape_cast %471 : vector<8x2xi32> to vector<1x8x2xi32>
    tpu.vector_store %arg11[%473, %c0_98, %c0_99], %476 {strides = array<i32>} : memref<8x8x2xi32, #tpu.memory_space<vmem>>, vector<1x8x2xi32>,
    %c0_100 = arith.constant 0 : index
    %c7 = arith.constant 7 : index
    %c0_101 = arith.constant 0 : index
    %477 = vector.load %arg10[%c0_100, %c7, %c0_101] : memref<2x8x8xf32, #tpu.memory_space<vmem>>, vector<2x1x8xf32>
    %478 = vector.shape_cast %477 : vector<2x1x8xf32> to vector<2x8xf32>
    %479 = tpu.transpose %478, [1, 0] : vector<2x8xf32> -> vector<8x2xf32>
    %480 = arith.addf %469, %479 : vector<8x2xf32>
    %c0_102 = arith.constant 0 : index
    %c0_103 = arith.constant 0 : index
    %481 = vector.load %arg9[%c0_102, %c0_103] : memref<8x2xf32, #tpu.memory_space<vmem>>, vector<8x2xf32>
    tpu.vector_store %arg9[%c0_102, %c0_103], %480 {strides = array<i32>} : memref<8x2xf32, #tpu.memory_space<vmem>>, vector<8x2xf32>,
    %c0_i32_104 = arith.constant 0 : i32
    %482 = arith.cmpi eq, %arg1, %c0_i32_104 : i32
    %483 = arith.extui %482 : i1 to i32
    %c0_i32_105 = arith.constant 0 : i32
    %484 = arith.cmpi ne, %483, %c0_i32_105 : i32
    scf.if %484 {
      %485 = tpu.iota {dimensions = array<i32: 0>} : vector<8x2xi32>
      %c0_106 = arith.constant 0 : index
      %c0_107 = arith.constant 0 : index
      %486 = vector.load %arg9[%c0_106, %c0_107] : memref<8x2xf32, #tpu.memory_space<vmem>>, vector<8x2xf32>
      %c0_108 = arith.constant 0 : index
      %c0_109 = arith.constant 0 : index
      %487 = vector.load %arg6[%c0_108, %c0_109] : memref<8x1xf32, #tpu.memory_space<vmem>>, vector<8x1xf32>
      %488 = vector.broadcast %487 : vector<8x1xf32> to vector<8x2xf32>
      %489 = arith.addf %486, %488 : vector<8x2xf32>
      %cst_110 = arith.constant dense<0xFF800000> : vector<2xf32>
      %490 = vector.multi_reduction <maximumf>, %489, %cst_110 [0] : vector<8x2xf32> to vector<2xf32>
      %491 = vector.shape_cast %490 : vector<2xf32> to vector<1x2xf32>
      %492 = vector.broadcast %491 : vector<1x2xf32> to vector<8x2xf32>
      %493 = arith.cmpf oeq, %489, %492 : vector<8x2xf32>
      %c8_i32_111 = arith.constant 8 : i32
      %494 = vector.broadcast %c8_i32_111 : i32 to vector<8x2xi32>
      %495 = arith.select %493, %485, %494 : vector<8x2xi1>, vector<8x2xi32>
      %cst_112 = arith.constant dense<2147483647> : vector<2xi32>
      %496 = vector.multi_reduction <minsi>, %495, %cst_112 [0] : vector<8x2xi32> to vector<2xi32>
      %497 = vector.shape_cast %496 : vector<2xi32> to vector<1x2xi32>
      %c7_113 = arith.constant 7 : index
      %c0_114 = arith.constant 0 : index
      %c0_115 = arith.constant 0 : index
      %498 = vector.load %arg8[%c7_113, %c0_114, %c0_115] : memref<8x1x2xi32, #tpu.memory_space<vmem>>, vector<1x1x2xi32>
      %499 = vector.shape_cast %498 : vector<1x1x2xi32> to vector<1x2xi32>
      %500 = vector.shape_cast %497 : vector<1x2xi32> to vector<1x1x2xi32>
      tpu.vector_store %arg8[%c7_113, %c0_114, %c0_115], %500 {strides = array<i32>} : memref<8x1x2xi32, #tpu.memory_space<vmem>>, vector<1x1x2xi32>,
      %c0_i32_116 = arith.constant 0 : i32
      %c6_i32_117 = arith.constant 6 : i32
      %501 = arith.subi %c6_i32_117, %c0_i32_116 : i32
      %c1_i32_118 = arith.constant 1 : i32
      %502 = arith.addi %501, %c1_i32_118 : i32
      %503 = arith.index_cast %502 : i32 to index
      %c0_119 = arith.constant 0 : index
      %c0_120 = arith.constant 0 : index
      %504 = vector.load %arg11[%503, %c0_119, %c0_120] : memref<8x8x2xi32, #tpu.memory_space<vmem>>, vector<1x8x2xi32>
      %505 = vector.shape_cast %504 : vector<1x8x2xi32> to vector<8x2xi32>
      %506 = vector.broadcast %497 : vector<1x2xi32> to vector<8x2xi32>
      %507 = arith.cmpi eq, %485, %506 : vector<8x2xi32>
      %c0_i32_121 = arith.constant 0 : i32
      %508 = vector.broadcast %c0_i32_121 : i32 to vector<8x2xi32>
      %509 = arith.select %507, %505, %508 : vector<8x2xi1>, vector<8x2xi32>
      %cst_122 = arith.constant dense<0> : vector<2xi32>
      %510 = vector.multi_reduction <add>, %509, %cst_122 [0] : vector<8x2xi32> to vector<2xi32>
      %511 = vector.shape_cast %510 : vector<2xi32> to vector<1x2xi32>
      %512 = arith.index_cast %501 : i32 to index
      %c0_123 = arith.constant 0 : index
      %c0_124 = arith.constant 0 : index
      %513 = vector.load %arg8[%512, %c0_123, %c0_124] : memref<8x1x2xi32, #tpu.memory_space<vmem>>, vector<1x1x2xi32>
      %514 = vector.shape_cast %513 : vector<1x1x2xi32> to vector<1x2xi32>
      %515 = vector.shape_cast %511 : vector<1x2xi32> to vector<1x1x2xi32>
      tpu.vector_store %arg8[%512, %c0_123, %c0_124], %515 {strides = array<i32>} : memref<8x1x2xi32, #tpu.memory_space<vmem>>, vector<1x1x2xi32>,
      %c1_i32_125 = arith.constant 1 : i32
      %c6_i32_126 = arith.constant 6 : i32
      %516 = arith.subi %c6_i32_126, %c1_i32_125 : i32
      %c1_i32_127 = arith.constant 1 : i32
      %517 = arith.addi %516, %c1_i32_127 : i32
      %518 = arith.index_cast %517 : i32 to index
      %c0_128 = arith.constant 0 : index
      %c0_129 = arith.constant 0 : index
      %519 = vector.load %arg11[%518, %c0_128, %c0_129] : memref<8x8x2xi32, #tpu.memory_space<vmem>>, vector<1x8x2xi32>
      %520 = vector.shape_cast %519 : vector<1x8x2xi32> to vector<8x2xi32>
      %521 = vector.broadcast %511 : vector<1x2xi32> to vector<8x2xi32>
      %522 = arith.cmpi eq, %485, %521 : vector<8x2xi32>
      %c0_i32_130 = arith.constant 0 : i32
      %523 = vector.broadcast %c0_i32_130 : i32 to vector<8x2xi32>
      %524 = arith.select %522, %520, %523 : vector<8x2xi1>, vector<8x2xi32>
      %cst_131 = arith.constant dense<0> : vector<2xi32>
      %525 = vector.multi_reduction <add>, %524, %cst_131 [0] : vector<8x2xi32> to vector<2xi32>
      %526 = vector.shape_cast %525 : vector<2xi32> to vector<1x2xi32>
      %527 = arith.index_cast %516 : i32 to index
      %c0_132 = arith.constant 0 : index
      %c0_133 = arith.constant 0 : index
      %528 = vector.load %arg8[%527, %c0_132, %c0_133] : memref<8x1x2xi32, #tpu.memory_space<vmem>>, vector<1x1x2xi32>
      %529 = vector.shape_cast %528 : vector<1x1x2xi32> to vector<1x2xi32>
      %530 = vector.shape_cast %526 : vector<1x2xi32> to vector<1x1x2xi32>
      tpu.vector_store %arg8[%527, %c0_132, %c0_133], %530 {strides = array<i32>} : memref<8x1x2xi32, #tpu.memory_space<vmem>>, vector<1x1x2xi32>,
      %c2_i32_134 = arith.constant 2 : i32
      %c6_i32_135 = arith.constant 6 : i32
      %531 = arith.subi %c6_i32_135, %c2_i32_134 : i32
      %c1_i32_136 = arith.constant 1 : i32
      %532 = arith.addi %531, %c1_i32_136 : i32
      %533 = arith.index_cast %532 : i32 to index
      %c0_137 = arith.constant 0 : index
      %c0_138 = arith.constant 0 : index
      %534 = vector.load %arg11[%533, %c0_137, %c0_138] : memref<8x8x2xi32, #tpu.memory_space<vmem>>, vector<1x8x2xi32>
      %535 = vector.shape_cast %534 : vector<1x8x2xi32> to vector<8x2xi32>
      %536 = vector.broadcast %526 : vector<1x2xi32> to vector<8x2xi32>
      %537 = arith.cmpi eq, %485, %536 : vector<8x2xi32>
      %c0_i32_139 = arith.constant 0 : i32
      %538 = vector.broadcast %c0_i32_139 : i32 to vector<8x2xi32>
      %539 = arith.select %537, %535, %538 : vector<8x2xi1>, vector<8x2xi32>
      %cst_140 = arith.constant dense<0> : vector<2xi32>
      %540 = vector.multi_reduction <add>, %539, %cst_140 [0] : vector<8x2xi32> to vector<2xi32>
      %541 = vector.shape_cast %540 : vector<2xi32> to vector<1x2xi32>
      %542 = arith.index_cast %531 : i32 to index
      %c0_141 = arith.constant 0 : index
      %c0_142 = arith.constant 0 : index
      %543 = vector.load %arg8[%542, %c0_141, %c0_142] : memref<8x1x2xi32, #tpu.memory_space<vmem>>, vector<1x1x2xi32>
      %544 = vector.shape_cast %543 : vector<1x1x2xi32> to vector<1x2xi32>
      %545 = vector.shape_cast %541 : vector<1x2xi32> to vector<1x1x2xi32>
      tpu.vector_store %arg8[%542, %c0_141, %c0_142], %545 {strides = array<i32>} : memref<8x1x2xi32, #tpu.memory_space<vmem>>, vector<1x1x2xi32>,
      %c3_i32_143 = arith.constant 3 : i32
      %c6_i32_144 = arith.constant 6 : i32
      %546 = arith.subi %c6_i32_144, %c3_i32_143 : i32
      %c1_i32_145 = arith.constant 1 : i32
      %547 = arith.addi %546, %c1_i32_145 : i32
      %548 = arith.index_cast %547 : i32 to index
      %c0_146 = arith.constant 0 : index
      %c0_147 = arith.constant 0 : index
      %549 = vector.load %arg11[%548, %c0_146, %c0_147] : memref<8x8x2xi32, #tpu.memory_space<vmem>>, vector<1x8x2xi32>
      %550 = vector.shape_cast %549 : vector<1x8x2xi32> to vector<8x2xi32>
      %551 = vector.broadcast %541 : vector<1x2xi32> to vector<8x2xi32>
      %552 = arith.cmpi eq, %485, %551 : vector<8x2xi32>
      %c0_i32_148 = arith.constant 0 : i32
      %553 = vector.broadcast %c0_i32_148 : i32 to vector<8x2xi32>
      %554 = arith.select %552, %550, %553 : vector<8x2xi1>, vector<8x2xi32>
      %cst_149 = arith.constant dense<0> : vector<2xi32>
      %555 = vector.multi_reduction <add>, %554, %cst_149 [0] : vector<8x2xi32> to vector<2xi32>
      %556 = vector.shape_cast %555 : vector<2xi32> to vector<1x2xi32>
      %557 = arith.index_cast %546 : i32 to index
      %c0_150 = arith.constant 0 : index
      %c0_151 = arith.constant 0 : index
      %558 = vector.load %arg8[%557, %c0_150, %c0_151] : memref<8x1x2xi32, #tpu.memory_space<vmem>>, vector<1x1x2xi32>
      %559 = vector.shape_cast %558 : vector<1x1x2xi32> to vector<1x2xi32>
      %560 = vector.shape_cast %556 : vector<1x2xi32> to vector<1x1x2xi32>
      tpu.vector_store %arg8[%557, %c0_150, %c0_151], %560 {strides = array<i32>} : memref<8x1x2xi32, #tpu.memory_space<vmem>>, vector<1x1x2xi32>,
      %c4_i32_152 = arith.constant 4 : i32
      %c6_i32_153 = arith.constant 6 : i32
      %561 = arith.subi %c6_i32_153, %c4_i32_152 : i32
      %c1_i32_154 = arith.constant 1 : i32
      %562 = arith.addi %561, %c1_i32_154 : i32
      %563 = arith.index_cast %562 : i32 to index
      %c0_155 = arith.constant 0 : index
      %c0_156 = arith.constant 0 : index
      %564 = vector.load %arg11[%563, %c0_155, %c0_156] : memref<8x8x2xi32, #tpu.memory_space<vmem>>, vector<1x8x2xi32>
      %565 = vector.shape_cast %564 : vector<1x8x2xi32> to vector<8x2xi32>
      %566 = vector.broadcast %556 : vector<1x2xi32> to vector<8x2xi32>
      %567 = arith.cmpi eq, %485, %566 : vector<8x2xi32>
      %c0_i32_157 = arith.constant 0 : i32
      %568 = vector.broadcast %c0_i32_157 : i32 to vector<8x2xi32>
      %569 = arith.select %567, %565, %568 : vector<8x2xi1>, vector<8x2xi32>
      %cst_158 = arith.constant dense<0> : vector<2xi32>
      %570 = vector.multi_reduction <add>, %569, %cst_158 [0] : vector<8x2xi32> to vector<2xi32>
      %571 = vector.shape_cast %570 : vector<2xi32> to vector<1x2xi32>
      %572 = arith.index_cast %561 : i32 to index
      %c0_159 = arith.constant 0 : index
      %c0_160 = arith.constant 0 : index
      %573 = vector.load %arg8[%572, %c0_159, %c0_160] : memref<8x1x2xi32, #tpu.memory_space<vmem>>, vector<1x1x2xi32>
      %574 = vector.shape_cast %573 : vector<1x1x2xi32> to vector<1x2xi32>
      %575 = vector.shape_cast %571 : vector<1x2xi32> to vector<1x1x2xi32>
      tpu.vector_store %arg8[%572, %c0_159, %c0_160], %575 {strides = array<i32>} : memref<8x1x2xi32, #tpu.memory_space<vmem>>, vector<1x1x2xi32>,
      %c5_i32_161 = arith.constant 5 : i32
      %c6_i32_162 = arith.constant 6 : i32
      %576 = arith.subi %c6_i32_162, %c5_i32_161 : i32
      %c1_i32_163 = arith.constant 1 : i32
      %577 = arith.addi %576, %c1_i32_163 : i32
      %578 = arith.index_cast %577 : i32 to index
      %c0_164 = arith.constant 0 : index
      %c0_165 = arith.constant 0 : index
      %579 = vector.load %arg11[%578, %c0_164, %c0_165] : memref<8x8x2xi32, #tpu.memory_space<vmem>>, vector<1x8x2xi32>
      %580 = vector.shape_cast %579 : vector<1x8x2xi32> to vector<8x2xi32>
      %581 = vector.broadcast %571 : vector<1x2xi32> to vector<8x2xi32>
      %582 = arith.cmpi eq, %485, %581 : vector<8x2xi32>
      %c0_i32_166 = arith.constant 0 : i32
      %583 = vector.broadcast %c0_i32_166 : i32 to vector<8x2xi32>
      %584 = arith.select %582, %580, %583 : vector<8x2xi1>, vector<8x2xi32>
      %cst_167 = arith.constant dense<0> : vector<2xi32>
      %585 = vector.multi_reduction <add>, %584, %cst_167 [0] : vector<8x2xi32> to vector<2xi32>
      %586 = vector.shape_cast %585 : vector<2xi32> to vector<1x2xi32>
      %587 = arith.index_cast %576 : i32 to index
      %c0_168 = arith.constant 0 : index
      %c0_169 = arith.constant 0 : index
      %588 = vector.load %arg8[%587, %c0_168, %c0_169] : memref<8x1x2xi32, #tpu.memory_space<vmem>>, vector<1x1x2xi32>
      %589 = vector.shape_cast %588 : vector<1x1x2xi32> to vector<1x2xi32>
      %590 = vector.shape_cast %586 : vector<1x2xi32> to vector<1x1x2xi32>
      tpu.vector_store %arg8[%587, %c0_168, %c0_169], %590 {strides = array<i32>} : memref<8x1x2xi32, #tpu.memory_space<vmem>>, vector<1x1x2xi32>,
      %c6_i32_170 = arith.constant 6 : i32
      %c6_i32_171 = arith.constant 6 : i32
      %591 = arith.subi %c6_i32_171, %c6_i32_170 : i32
      %c1_i32_172 = arith.constant 1 : i32
      %592 = arith.addi %591, %c1_i32_172 : i32
      %593 = arith.index_cast %592 : i32 to index
      %c0_173 = arith.constant 0 : index
      %c0_174 = arith.constant 0 : index
      %594 = vector.load %arg11[%593, %c0_173, %c0_174] : memref<8x8x2xi32, #tpu.memory_space<vmem>>, vector<1x8x2xi32>
      %595 = vector.shape_cast %594 : vector<1x8x2xi32> to vector<8x2xi32>
      %596 = vector.broadcast %586 : vector<1x2xi32> to vector<8x2xi32>
      %597 = arith.cmpi eq, %485, %596 : vector<8x2xi32>
      %c0_i32_175 = arith.constant 0 : i32
      %598 = vector.broadcast %c0_i32_175 : i32 to vector<8x2xi32>
      %599 = arith.select %597, %595, %598 : vector<8x2xi1>, vector<8x2xi32>
      %cst_176 = arith.constant dense<0> : vector<2xi32>
      %600 = vector.multi_reduction <add>, %599, %cst_176 [0] : vector<8x2xi32> to vector<2xi32>
      %601 = vector.shape_cast %600 : vector<2xi32> to vector<1x2xi32>
      %602 = arith.index_cast %591 : i32 to index
      %c0_177 = arith.constant 0 : index
      %c0_178 = arith.constant 0 : index
      %603 = vector.load %arg8[%602, %c0_177, %c0_178] : memref<8x1x2xi32, #tpu.memory_space<vmem>>, vector<1x1x2xi32>
      %604 = vector.shape_cast %603 : vector<1x1x2xi32> to vector<1x2xi32>
      %605 = vector.shape_cast %601 : vector<1x2xi32> to vector<1x1x2xi32>
      tpu.vector_store %arg8[%602, %c0_177, %c0_178], %605 {strides = array<i32>} : memref<8x1x2xi32, #tpu.memory_space<vmem>>, vector<1x1x2xi32>,
      %c7_i32_179 = arith.constant 7 : i32
    } else {
    }
    return
  }
  func.func @transform_0(%arg0: i32, %arg1: i32) -> (i32, i32, i32) {
    %c0_i32 = arith.constant 0 : i32
    %c0_i32_0 = arith.constant 0 : i32
    return %arg0, %arg1, %c0_i32 : i32, i32, i32
  }
  func.func @transform_1(%arg0: i32, %arg1: i32) -> (i32, i32) {
    %c0_i32 = arith.constant 0 : i32
    %c0_i32_0 = arith.constant 0 : i32
    %c0_i32_1 = arith.constant 0 : i32
    return %c0_i32, %c0_i32_0 : i32, i32
  }
  func.func @transform_2(%arg0: i32, %arg1: i32) -> (i32, i32) {
    %c0_i32 = arith.constant 0 : i32
    %c0_i32_0 = arith.constant 0 : i32
    %c0_i32_1 = arith.constant 0 : i32
    return %c0_i32, %c0_i32_0 : i32, i32
  }
  func.func @transform_3(%arg0: i32, %arg1: i32) -> (i32, i32) {
    %c0_i32 = arith.constant 0 : i32
    %c0_i32_0 = arith.constant 0 : i32
    %c0_i32_1 = arith.constant 0 : i32
    return %c0_i32, %c0_i32_0 : i32, i32
  }
  func.func @transform_4(%arg0: i32, %arg1: i32) -> (i32, i32) {
    %c0_i32 = arith.constant 0 : i32
    %c0_i32_0 = arith.constant 0 : i32
    %c0_i32_1 = arith.constant 0 : i32
    return %c0_i32, %c0_i32_0 : i32, i32
  }
  func.func @transform_5(%arg0: i32, %arg1: i32) -> (i32, i32) {
    %c0_i32 = arith.constant 0 : i32
    %c0_i32_0 = arith.constant 0 : i32
    %c0_i32_1 = arith.constant 0 : i32
    return %c0_i32, %c0_i32_0 : i32, i32
  }
  func.func @transform_6(%arg0: i32, %arg1: i32) -> (i32, i32, i32) {
    %c0_i32 = arith.constant 0 : i32
    %c0_i32_0 = arith.constant 0 : i32
    %c0_i32_1 = arith.constant 0 : i32
    return %c0_i32, %c0_i32_0, %arg0 : i32, i32, i32
  }
}

</mosaic_0001>

<llo_original>
// kernel: bert_crf_forward.1
$region0: #{bert_crf_forward.1}
  #allocation0 [shape = 'u32[]', space=smem, size = 0x4, offset = 0x4, fixed_abs, tag = 'smem constant byte address 0x4 - core index']
  #allocation1 [shape = 'u32[72,128]{1,0:T(1,128)}', space=vmem, size = 0x9000, scoped, tag = 'internal scratch']
  #allocation2 [shape = 'f32[8,2]{1,0:T(8,128)}', space=vmem, size = 0x1000, scoped, tag = 'scratch operand']
  #allocation3 [shape = 'f32[2,8,8]{2,1,0:T(8,128)}', space=vmem, size = 0x2000, scoped, tag = 'scratch operand']
  #allocation4 [shape = 's32[8,8,2]{2,1,0:T(8,128)}', space=vmem, size = 0x8000, scoped, tag = 'scratch operand']
  %s0 = inlined_call_operand.vmem [shape: f32[2,8,768], index: 0, kind: input, shape index: {}]
  %s1 = inlined_call_operand.vmem [shape: bf16[768,8], index: 1, kind: input, shape index: {}]
  %s2 = inlined_call_operand.vmem [shape: f32[1,8], index: 2, kind: input, shape index: {}]
  %s3 = inlined_call_operand.vmem [shape: f32[8,1], index: 3, kind: input, shape index: {}]
  %s4 = inlined_call_operand.vmem [shape: f32[8,1], index: 4, kind: input, shape index: {}]
  %s5 = inlined_call_operand.vmem [shape: f32[8,8], index: 5, kind: input, shape index: {}]
  %s6 = inlined_call_operand.vmem [shape: s32[8,1,2], index: 6, kind: output, shape index: {}]
  %s7 = sld [smem:[#allocation0]]
  $region50: #{bert_crf_forward.1} parent=0
    _
  %s9 = ssub.s32 1, %s7
  %s10 = scalar_select 0, %s9, %s7
  // Predicated region
  $region2: #{bert_crf_forward.1} parent=0 // pred_check
    _
  $region3: #{bert_crf_forward.1} parent=0 // pred_check_branch
    %12 = sbr.rel (0) target = $region5
  $region4: #{bert_crf_forward.1} parent=0 // pred_region
    _
  $region5: #{bert_crf_forward.1} parent=0 // pred_fallthru
    _
  // Predicated region
  $region6: #{bert_crf_forward.1} parent=0 // pred_check
    _
  $region7: #{bert_crf_forward.1} parent=0 // pred_check_branch
    %14 = sbr.rel (0) target = $region9
  $region8: #{bert_crf_forward.1} parent=0 // pred_region
    _
  $region9: #{bert_crf_forward.1} parent=0 // pred_fallthru
    _
  // Predicated region
  $region10: #{bert_crf_forward.1} parent=0 // pred_check
    _
  $region11: #{bert_crf_forward.1} parent=0 // pred_check_branch
    %16 = sbr.rel (0) target = $region13
  $region12: #{bert_crf_forward.1} parent=0 // pred_region
    _
  $region13: #{bert_crf_forward.1} parent=0 // pred_fallthru
    _
  // Predicated region
  $region14: #{bert_crf_forward.1} parent=0 // pred_check
    _
  $region15: #{bert_crf_forward.1} parent=0 // pred_check_branch
    %18 = sbr.rel (0) target = $region17
  $region16: #{bert_crf_forward.1} parent=0 // pred_region
    _
  $region17: #{bert_crf_forward.1} parent=0 // pred_fallthru
    _
  // Predicated region
  $region18: #{bert_crf_forward.1} parent=0 // pred_check
    _
  $region19: #{bert_crf_forward.1} parent=0 // pred_check_branch
    %20 = sbr.rel (0) target = $region21
  $region20: #{bert_crf_forward.1} parent=0 // pred_region
    _
  $region21: #{bert_crf_forward.1} parent=0 // pred_fallthru
    _
  // Predicated region
  $region22: #{bert_crf_forward.1} parent=0 // pred_check
    _
  $region23: #{bert_crf_forward.1} parent=0 // pred_check_branch
    %22 = sbr.rel (0) target = $region25
  $region24: #{bert_crf_forward.1} parent=0 // pred_region
    _
  $region25: #{bert_crf_forward.1} parent=0 // pred_fallthru
    _
  %s23 = smul.u32 0, 8
  %p24 = scmp.eq.s32.totalorder 0, 0
  // Predicated region
  $region26: #{bert_crf_forward.1} parent=0 // pred_check
    %p25 = pneg %p24
  $region27: #{bert_crf_forward.1} parent=0 // pred_check_branch
    %27 = sbr.rel (%p25) target = $region29
  $region28: #{bert_crf_forward.1} parent=0 // pred_region
    %vm28 = vcmask 8192
    %29 = vst.msk [vmem:[%s6] sm:$0x1] %vm28, 0
    %30 = vst.msk [vmem:[%s6 + $0x1] sm:$0x1] %vm28, 0
    %31 = vst.msk [vmem:[%s6 + $0x2] sm:$0x1] %vm28, 0
    %32 = vst.msk [vmem:[%s6 + $0x3] sm:$0x1] %vm28, 0
    %33 = vst.msk [vmem:[%s6 + $0x4] sm:$0x1] %vm28, 0
    %34 = vst.msk [vmem:[%s6 + $0x5] sm:$0x1] %vm28, 0
    %35 = vst.msk [vmem:[%s6 + $0x6] sm:$0x1] %vm28, 0
    %36 = vst.msk [vmem:[%s6 + $0x7] sm:$0x1] %vm28, 0
  $region29: #{bert_crf_forward.1} parent=0 // pred_fallthru
    _
  %v37 = vld [vmem:[%s1] sm:$0xf]
  %v38 = vld [vmem:[%s1 + $0x4] sm:$0xf]
  %v39 = vld [vmem:[%s1 + $0x8] sm:$0xf]
  %v40 = vld [vmem:[%s1 + $0xc] sm:$0xf]
  %v41 = vld [vmem:[%s1 + $0x10] sm:$0xf]
  %v42 = vld [vmem:[%s1 + $0x14] sm:$0xf]
  %v43 = vld [vmem:[%s1 + $0x18] sm:$0xf]
  %v44 = vld [vmem:[%s1 + $0x1c] sm:$0xf]
  %v45 = vld [vmem:[%s1 + $0x20] sm:$0xf]
  %v46 = vld [vmem:[%s1 + $0x24] sm:$0xf]
  %v47 = vld [vmem:[%s1 + $0x28] sm:$0xf]
  %v48 = vld [vmem:[%s1 + $0x2c] sm:$0xf]
  %v49 = vld [vmem:[%s1 + $0x30] sm:$0xf]
  %v50 = vld [vmem:[%s1 + $0x34] sm:$0xf]
  %v51 = vld [vmem:[%s1 + $0x38] sm:$0xf]
  %v52 = vld [vmem:[%s1 + $0x3c] sm:$0xf]
  %v53 = vld [vmem:[%s1 + $0x40] sm:$0xf]
  %v54 = vld [vmem:[%s1 + $0x44] sm:$0xf]
  %v55 = vld [vmem:[%s1 + $0x48] sm:$0xf]
  %v56 = vld [vmem:[%s1 + $0x4c] sm:$0xf]
  %v57 = vld [vmem:[%s1 + $0x50] sm:$0xf]
  %v58 = vld [vmem:[%s1 + $0x54] sm:$0xf]
  %v59 = vld [vmem:[%s1 + $0x58] sm:$0xf]
  %v60 = vld [vmem:[%s1 + $0x5c] sm:$0xf]
  %v61 = vld [vmem:[%s1 + $0x60] sm:$0xf]
  %v62 = vld [vmem:[%s1 + $0x64] sm:$0xf]
  %v63 = vld [vmem:[%s1 + $0x68] sm:$0xf]
  %v64 = vld [vmem:[%s1 + $0x6c] sm:$0xf]
  %v65 = vld [vmem:[%s1 + $0x70] sm:$0xf]
  %v66 = vld [vmem:[%s1 + $0x74] sm:$0xf]
  %v67 = vld [vmem:[%s1 + $0x78] sm:$0xf]
  %v68 = vld [vmem:[%s1 + $0x7c] sm:$0xf]
  %v69 = vld [vmem:[%s1 + $0x80] sm:$0xf]
  %v70 = vld [vmem:[%s1 + $0x84] sm:$0xf]
  %v71 = vld [vmem:[%s1 + $0x88] sm:$0xf]
  %v72 = vld [vmem:[%s1 + $0x8c] sm:$0xf]
  %v73 = vld [vmem:[%s1 + $0x90] sm:$0xf]
  %v74 = vld [vmem:[%s1 + $0x94] sm:$0xf]
  %v75 = vld [vmem:[%s1 + $0x98] sm:$0xf]
  %v76 = vld [vmem:[%s1 + $0x9c] sm:$0xf]
  %v77 = vld [vmem:[%s1 + $0xa0] sm:$0xf]
  %v78 = vld [vmem:[%s1 + $0xa4] sm:$0xf]
  %v79 = vld [vmem:[%s1 + $0xa8] sm:$0xf]
  %v80 = vld [vmem:[%s1 + $0xac] sm:$0xf]
  %v81 = vld [vmem:[%s1 + $0xb0] sm:$0xf]
  %v82 = vld [vmem:[%s1 + $0xb4] sm:$0xf]
  %v83 = vld [vmem:[%s1 + $0xb8] sm:$0xf]
  %v84 = vld [vmem:[%s1 + $0xbc] sm:$0xf]
  %v85 = vld [vmem:[%s1 + $0xc0] sm:$0xf]
  %v86 = vld [vmem:[%s1 + $0xc4] sm:$0xf]
  %v87 = vld [vmem:[%s1 + $0xc8] sm:$0xf]
  %v88 = vld [vmem:[%s1 + $0xcc] sm:$0xf]
  %v89 = vld [vmem:[%s1 + $0xd0] sm:$0xf]
  %v90 = vld [vmem:[%s1 + $0xd4] sm:$0xf]
  %v91 = vld [vmem:[%s1 + $0xd8] sm:$0xf]
  %v92 = vld [vmem:[%s1 + $0xdc] sm:$0xf]
  %v93 = vld [vmem:[%s1 + $0xe0] sm:$0xf]
  %v94 = vld [vmem:[%s1 + $0xe4] sm:$0xf]
  %v95 = vld [vmem:[%s1 + $0xe8] sm:$0xf]
  %v96 = vld [vmem:[%s1 + $0xec] sm:$0xf]
  %v97 = vld [vmem:[%s1 + $0xf0] sm:$0xf]
  %v98 = vld [vmem:[%s1 + $0xf4] sm:$0xf]
  %v99 = vld [vmem:[%s1 + $0xf8] sm:$0xf]
  %v100 = vld [vmem:[%s1 + $0xfc] sm:$0xf]
  %v101 = vld [vmem:[%s1 + $0x100] sm:$0xf]
  %v102 = vld [vmem:[%s1 + $0x104] sm:$0xf]
  %v103 = vld [vmem:[%s1 + $0x108] sm:$0xf]
  %v104 = vld [vmem:[%s1 + $0x10c] sm:$0xf]
  %v105 = vld [vmem:[%s1 + $0x110] sm:$0xf]
  %v106 = vld [vmem:[%s1 + $0x114] sm:$0xf]
  %v107 = vld [vmem:[%s1 + $0x118] sm:$0xf]
  %v108 = vld [vmem:[%s1 + $0x11c] sm:$0xf]
  %v109 = vld [vmem:[%s1 + $0x120] sm:$0xf]
  %v110 = vld [vmem:[%s1 + $0x124] sm:$0xf]
  %v111 = vld [vmem:[%s1 + $0x128] sm:$0xf]
  %v112 = vld [vmem:[%s1 + $0x12c] sm:$0xf]
  %v113 = vld [vmem:[%s1 + $0x130] sm:$0xf]
  %v114 = vld [vmem:[%s1 + $0x134] sm:$0xf]
  %v115 = vld [vmem:[%s1 + $0x138] sm:$0xf]
  %v116 = vld [vmem:[%s1 + $0x13c] sm:$0xf]
  %v117 = vld [vmem:[%s1 + $0x140] sm:$0xf]
  %v118 = vld [vmem:[%s1 + $0x144] sm:$0xf]
  %v119 = vld [vmem:[%s1 + $0x148] sm:$0xf]
  %v120 = vld [vmem:[%s1 + $0x14c] sm:$0xf]
  %v121 = vld [vmem:[%s1 + $0x150] sm:$0xf]
  %v122 = vld [vmem:[%s1 + $0x154] sm:$0xf]
  %v123 = vld [vmem:[%s1 + $0x158] sm:$0xf]
  %v124 = vld [vmem:[%s1 + $0x15c] sm:$0xf]
  %v125 = vld [vmem:[%s1 + $0x160] sm:$0xf]
  %v126 = vld [vmem:[%s1 + $0x164] sm:$0xf]
  %v127 = vld [vmem:[%s1 + $0x168] sm:$0xf]
  %v128 = vld [vmem:[%s1 + $0x16c] sm:$0xf]
  %v129 = vld [vmem:[%s1 + $0x170] sm:$0xf]
  %v130 = vld [vmem:[%s1 + $0x174] sm:$0xf]
  %v131 = vld [vmem:[%s1 + $0x178] sm:$0xf]
  %v132 = vld [vmem:[%s1 + $0x17c] sm:$0xf]
  %v133 = vld [vmem:[%s2] sm:$0x1]
  %v134 = vld [vmem:[%s0] sm:$0xff]
  %v135 = vld [vmem:[%s0 + $0x8] sm:$0xff]
  %v136 = vld [vmem:[%s0 + $0x10] sm:$0xff]
  %v137 = vld [vmem:[%s0 + $0x18] sm:$0xff]
  %v138 = vld [vmem:[%s0 + $0x20] sm:$0xff]
  %v139 = vld [vmem:[%s0 + $0x28] sm:$0xff]
  %v140 = vld [vmem:[%s0 + $0x30] sm:$0xff]
  %v141 = vld [vmem:[%s0 + $0x38] sm:$0xff]
  %v142 = vld [vmem:[%s0 + $0x40] sm:$0xff]
  %v143 = vld [vmem:[%s0 + $0x48] sm:$0xff]
  %v144 = vld [vmem:[%s0 + $0x50] sm:$0xff]
  %v145 = vld [vmem:[%s0 + $0x58] sm:$0xff]
  %v146 = vpack.c.bf16 %v140, %v134
  %v147 = vpack.c.bf16 %v141, %v135
  %v148 = vpack.c.bf16 %v142, %v136
  %v149 = vpack.c.bf16 %v143, %v137
  %v150 = vpack.c.bf16 %v144, %v138
  %v151 = vpack.c.bf16 %v145, %v139
  %v153 = vperm.slane %v133, 0
  %v251 = vunpack.c.l.b16 %v37
  %v252 = vunpack.c.l.b16 %v38
  %v253 = vunpack.c.l.b16 %v39
  %v254 = vunpack.c.l.b16 %v40
  %v255 = vunpack.c.l.b16 %v41
  %v256 = vunpack.c.l.b16 %v42
  %v257 = vunpack.c.l.b16 %v43
  %v258 = vunpack.c.l.b16 %v44
  %v259 = vunpack.c.l.b16 %v45
  %v260 = vunpack.c.l.b16 %v46
  %v261 = vunpack.c.l.b16 %v47
  %v262 = vunpack.c.l.b16 %v48
  %v263 = vunpack.c.l.b16 %v49
  %v264 = vunpack.c.l.b16 %v50
  %v265 = vunpack.c.l.b16 %v51
  %v266 = vunpack.c.l.b16 %v52
  %v267 = vunpack.c.l.b16 %v53
  %v268 = vunpack.c.l.b16 %v54
  %v269 = vunpack.c.l.b16 %v55
  %v270 = vunpack.c.l.b16 %v56
  %v271 = vunpack.c.l.b16 %v57
  %v272 = vunpack.c.l.b16 %v58
  %v273 = vunpack.c.l.b16 %v59
  %v274 = vunpack.c.l.b16 %v60
  %v275 = vunpack.c.l.b16 %v61
  %v276 = vunpack.c.l.b16 %v62
  %v277 = vunpack.c.l.b16 %v63
  %v278 = vunpack.c.l.b16 %v64
  %v279 = vunpack.c.l.b16 %v65
  %v280 = vunpack.c.l.b16 %v66
  %v281 = vunpack.c.l.b16 %v67
  %v282 = vunpack.c.l.b16 %v68
  %v283 = vunpack.c.l.b16 %v69
  %v284 = vunpack.c.l.b16 %v70
  %v285 = vunpack.c.l.b16 %v71
  %v286 = vunpack.c.l.b16 %v72
  %v287 = vunpack.c.l.b16 %v73
  %v288 = vunpack.c.l.b16 %v74
  %v289 = vunpack.c.l.b16 %v75
  %v290 = vunpack.c.l.b16 %v76
  %v291 = vunpack.c.l.b16 %v77
  %v292 = vunpack.c.l.b16 %v78
  %v293 = vunpack.c.l.b16 %v79
  %v294 = vunpack.c.l.b16 %v80
  %v295 = vunpack.c.l.b16 %v81
  %v296 = vunpack.c.l.b16 %v82
  %v297 = vunpack.c.l.b16 %v83
  %v298 = vunpack.c.l.b16 %v84
  %v299 = vunpack.c.l.b16 %v85
  %v300 = vunpack.c.l.b16 %v86
  %v301 = vunpack.c.l.b16 %v87
  %v302 = vunpack.c.l.b16 %v88
  %v303 = vunpack.c.l.b16 %v89
  %v304 = vunpack.c.l.b16 %v90
  %v305 = vunpack.c.l.b16 %v91
  %v306 = vunpack.c.l.b16 %v92
  %v307 = vunpack.c.l.b16 %v93
  %v308 = vunpack.c.l.b16 %v94
  %v309 = vunpack.c.l.b16 %v95
  %v310 = vunpack.c.l.b16 %v96
  %v311 = vunpack.c.l.b16 %v97
  %v312 = vunpack.c.l.b16 %v98
  %v313 = vunpack.c.l.b16 %v99
  %v314 = vunpack.c.l.b16 %v100
  %v315 = vunpack.c.l.b16 %v101
  %v316 = vunpack.c.l.b16 %v102
  %v317 = vunpack.c.l.b16 %v103
  %v318 = vunpack.c.l.b16 %v104
  %v319 = vunpack.c.l.b16 %v105
  %v320 = vunpack.c.l.b16 %v106
  %v321 = vunpack.c.l.b16 %v107
  %v322 = vunpack.c.l.b16 %v108
  %v323 = vunpack.c.l.b16 %v109
  %v324 = vunpack.c.l.b16 %v110
  %v325 = vunpack.c.l.b16 %v111
  %v326 = vunpack.c.l.b16 %v112
  %v327 = vunpack.c.l.b16 %v113
  %v328 = vunpack.c.l.b16 %v114
  %v329 = vunpack.c.l.b16 %v115
  %v330 = vunpack.c.l.b16 %v116
  %v331 = vunpack.c.l.b16 %v117
  %v332 = vunpack.c.l.b16 %v118
  %v333 = vunpack.c.l.b16 %v119
  %v334 = vunpack.c.l.b16 %v120
  %v335 = vunpack.c.l.b16 %v121
  %v336 = vunpack.c.l.b16 %v122
  %v337 = vunpack.c.l.b16 %v123
  %v338 = vunpack.c.l.b16 %v124
  %v339 = vunpack.c.l.b16 %v125
  %v340 = vunpack.c.l.b16 %v126
  %v341 = vunpack.c.l.b16 %v127
  %v342 = vunpack.c.l.b16 %v128
  %v343 = vunpack.c.l.b16 %v129
  %v344 = vunpack.c.l.b16 %v130
  %v345 = vunpack.c.l.b16 %v131
  %v346 = vunpack.c.l.b16 %v132
  %v347 = vpack.c.b16 %v252, %v251
  %v348 = vpack.c.b16 %v254, %v253
  %v349 = vpack.c.b16 %v256, %v255
  %v350 = vpack.c.b16 %v258, %v257
  %v351 = vpack.c.b16 %v260, %v259
  %v352 = vpack.c.b16 %v262, %v261
  %v353 = vpack.c.b16 %v264, %v263
  %v354 = vpack.c.b16 %v266, %v265
  %v355 = vpack.c.b16 %v268, %v267
  %v356 = vpack.c.b16 %v270, %v269
  %v357 = vpack.c.b16 %v272, %v271
  %v358 = vpack.c.b16 %v274, %v273
  %v359 = vpack.c.b16 %v276, %v275
  %v360 = vpack.c.b16 %v278, %v277
  %v361 = vpack.c.b16 %v280, %v279
  %v362 = vpack.c.b16 %v282, %v281
  %v363 = vpack.c.b16 %v284, %v283
  %v364 = vpack.c.b16 %v286, %v285
  %v365 = vpack.c.b16 %v288, %v287
  %v366 = vpack.c.b16 %v290, %v289
  %v367 = vpack.c.b16 %v292, %v291
  %v368 = vpack.c.b16 %v294, %v293
  %v369 = vpack.c.b16 %v296, %v295
  %v370 = vpack.c.b16 %v298, %v297
  %v371 = vpack.c.b16 %v300, %v299
  %v372 = vpack.c.b16 %v302, %v301
  %v373 = vpack.c.b16 %v304, %v303
  %v374 = vpack.c.b16 %v306, %v305
  %v375 = vpack.c.b16 %v308, %v307
  %v376 = vpack.c.b16 %v310, %v309
  %v377 = vpack.c.b16 %v312, %v311
  %v378 = vpack.c.b16 %v314, %v313
  %v379 = vpack.c.b16 %v316, %v315
  %v380 = vpack.c.b16 %v318, %v317
  %v381 = vpack.c.b16 %v320, %v319
  %v382 = vpack.c.b16 %v322, %v321
  %v383 = vpack.c.b16 %v324, %v323
  %v384 = vpack.c.b16 %v326, %v325
  %v385 = vpack.c.b16 %v328, %v327
  %v386 = vpack.c.b16 %v330, %v329
  %v387 = vpack.c.b16 %v332, %v331
  %v388 = vpack.c.b16 %v334, %v333
  %v389 = vpack.c.b16 %v336, %v335
  %v390 = vpack.c.b16 %v338, %v337
  %v391 = vpack.c.b16 %v340, %v339
  %v392 = vpack.c.b16 %v342, %v341
  %v393 = vpack.c.b16 %v344, %v343
  %v394 = vpack.c.b16 %v346, %v345
  %443 = vmatpush.bf16.msra.mxu0 %v354
  %444 = vmatpush.bf16.msra.mxu0 %v353
  %445 = vmatpush.bf16.msra.mxu0 %v352
  %446 = vmatpush.bf16.msra.mxu0 %v351
  %447 = vmatpush.bf16.msra.mxu0 %v350
  %448 = vmatpush.bf16.msra.mxu0 %v349
  %449 = vmatpush.bf16.msra.mxu0 %v348
  %450 = vmatpush.bf16.msra.mxu0 %v347
  %451 = vmatmul.bf16.gmra.mxu0 %v146
  %v452 = vpop.f32.mrf.mxu0
  %v453 = vadd.f32 %v153, %v452
  %v454 = vpop.f32.mrf.mxu0
  %v455 = vadd.f32 %v153, %v454
  %456 = vdwg.mxu0
  %457 = vmatpush.bf16.msra.mxu0 %v362
  %458 = vmatpush.bf16.msra.mxu0 %v361
  %459 = vmatpush.bf16.msra.mxu0 %v360
  %460 = vmatpush.bf16.msra.mxu0 %v359
  %461 = vmatpush.bf16.msra.mxu0 %v358
  %462 = vmatpush.bf16.msra.mxu0 %v357
  %463 = vmatpush.bf16.msra.mxu0 %v356
  %464 = vmatpush.bf16.msra.mxu0 %v355
  %465 = vmatmul.bf16.gmra.mxu0 %v147
  %v466 = vpop.f32.mrf.mxu0
  %v467 = vadd.f32 %v453, %v466
  %v468 = vpop.f32.mrf.mxu0
  %v469 = vadd.f32 %v455, %v468
  %470 = vdwg.mxu0
  %471 = vmatpush.bf16.msra.mxu0 %v370
  %472 = vmatpush.bf16.msra.mxu0 %v369
  %473 = vmatpush.bf16.msra.mxu0 %v368
  %474 = vmatpush.bf16.msra.mxu0 %v367
  %475 = vmatpush.bf16.msra.mxu0 %v366
  %476 = vmatpush.bf16.msra.mxu0 %v365
  %477 = vmatpush.bf16.msra.mxu0 %v364
  %478 = vmatpush.bf16.msra.mxu0 %v363
  %479 = vmatmul.bf16.gmra.mxu0 %v148
  %v480 = vpop.f32.mrf.mxu0
  %v481 = vadd.f32 %v467, %v480
  %v482 = vpop.f32.mrf.mxu0
  %v483 = vadd.f32 %v469, %v482
  %484 = vdwg.mxu0
  %485 = vmatpush.bf16.msra.mxu0 %v378
  %486 = vmatpush.bf16.msra.mxu0 %v377
  %487 = vmatpush.bf16.msra.mxu0 %v376
  %488 = vmatpush.bf16.msra.mxu0 %v375
  %489 = vmatpush.bf16.msra.mxu0 %v374
  %490 = vmatpush.bf16.msra.mxu0 %v373
  %491 = vmatpush.bf16.msra.mxu0 %v372
  %492 = vmatpush.bf16.msra.mxu0 %v371
  %493 = vmatmul.bf16.gmra.mxu0 %v149
  %v494 = vpop.f32.mrf.mxu0
  %v495 = vadd.f32 %v481, %v494
  %v496 = vpop.f32.mrf.mxu0
  %v497 = vadd.f32 %v483, %v496
  %498 = vdwg.mxu0
  %499 = vmatpush.bf16.msra.mxu0 %v386
  %500 = vmatpush.bf16.msra.mxu0 %v385
  %501 = vmatpush.bf16.msra.mxu0 %v384
  %502 = vmatpush.bf16.msra.mxu0 %v383
  %503 = vmatpush.bf16.msra.mxu0 %v382
  %504 = vmatpush.bf16.msra.mxu0 %v381
  %505 = vmatpush.bf16.msra.mxu0 %v380
  %506 = vmatpush.bf16.msra.mxu0 %v379
  %507 = vmatmul.bf16.gmra.mxu0 %v150
  %v508 = vpop.f32.mrf.mxu0
  %v509 = vadd.f32 %v495, %v508
  %v510 = vpop.f32.mrf.mxu0
  %v511 = vadd.f32 %v497, %v510
  %512 = vdwg.mxu0
  %513 = vmatpush.bf16.msra.mxu0 %v394
  %514 = vmatpush.bf16.msra.mxu0 %v393
  %515 = vmatpush.bf16.msra.mxu0 %v392
  %516 = vmatpush.bf16.msra.mxu0 %v391
  %517 = vmatpush.bf16.msra.mxu0 %v390
  %518 = vmatpush.bf16.msra.mxu0 %v389
  %519 = vmatpush.bf16.msra.mxu0 %v388
  %520 = vmatpush.bf16.msra.mxu0 %v387
  %521 = vmatmul.bf16.gmra.mxu0 %v151
  %v522 = vpop.f32.mrf.mxu0
  %v523 = vadd.f32 %v509, %v522
  %v524 = vpop.f32.mrf.mxu0
  %v525 = vadd.f32 %v511, %v524
  %526 = vdwg.mxu0
  %vm527 = vcmask 64512
  %528 = vst.msk [vmem:[#allocation3] sm:$0xff] %vm527, %v523
  %529 = vst.msk [vmem:[#allocation3 + $0x8] sm:$0xff] %vm527, %v525
  %v530 = vld [vmem:[%s5] sm:$0xff]
  %532 = vset.pattern.permute.xlu0 0
  %533 = vperm.xlu0 %532, %v530
  %v534 = vpop.permute.xlu0 %533
  %536 = vset.pattern.permute.xlu0 1
  %537 = vperm.xlu0 %536, %v530
  %v538 = vpop.permute.xlu0 %537
  %540 = vset.pattern.permute.xlu0 2
  %541 = vperm.xlu0 %540, %v530
  %v542 = vpop.permute.xlu0 %541
  %544 = vset.pattern.permute.xlu0 3
  %545 = vperm.xlu0 %544, %v530
  %v546 = vpop.permute.xlu0 %545
  %548 = vset.pattern.permute.xlu0 4
  %549 = vperm.xlu0 %548, %v530
  %v550 = vpop.permute.xlu0 %549
  %552 = vset.pattern.permute.xlu0 5
  %553 = vperm.xlu0 %552, %v530
  %v554 = vpop.permute.xlu0 %553
  %556 = vset.pattern.permute.xlu0 6
  %557 = vperm.xlu0 %556, %v530
  %v558 = vpop.permute.xlu0 %557
  %560 = vset.pattern.permute.xlu0 7
  %561 = vperm.xlu0 %560, %v530
  %v562 = vpop.permute.xlu0 %561
  // Predicated region
  $region30: #{bert_crf_forward.1} parent=0 // pred_check
    %p564 = pneg %p24
  $region31: #{bert_crf_forward.1} parent=0 // pred_check_branch
    %566 = sbr.rel (%p564) target = $region33
  $region32: #{bert_crf_forward.1} parent=0 // pred_region
    %v567 = vld [vmem:[%s3] sm:$0xff]
    %v568 = vld [vmem:[#allocation3] sm:$0x1]
    %v569 = vld [vmem:[#allocation3 + $0x8] sm:$0x1]
    %v572 = vrot.slane %v569, 7
    %vm573 = vcmask 1041409
    %v574 = vsel %vm573, %v572, %v568
    %576 = vxpose.xlu0.b32.start [1/16] %v574, 128
    %577 = vxpose.xlu0.b32.cont [2/16] 0.0, 128
    %578 = vxpose.xlu0.b32.cont [3/16] 0.0, 128
    %579 = vxpose.xlu0.b32.cont [4/16] 0.0, 128
    %580 = vxpose.xlu0.b32.cont [5/16] 0.0, 128
    %581 = vxpose.xlu0.b32.cont [6/16] 0.0, 128
    %582 = vxpose.xlu0.b32.cont [7/16] 0.0, 128
    %583 = vxpose.xlu0.b32.cont [8/16] 0.0, 128
    %584 = vxpose.xlu0.b32.cont [9/16] 0.0, 128
    %585 = vxpose.xlu0.b32.cont [10/16] 0.0, 128
    %586 = vxpose.xlu0.b32.cont [11/16] 0.0, 128
    %587 = vxpose.xlu0.b32.cont [12/16] 0.0, 128
    %588 = vxpose.xlu0.b32.cont [13/16] 0.0, 128
    %589 = vxpose.xlu0.b32.cont [14/16] 0.0, 128
    %590 = vxpose.xlu0.b32.cont [15/16] 0.0, 128
    %591 = vxpose.xlu0.b32.end [16/16] 0.0, 128
    %v592 = vpop.trf.xlu0
    %v593 = vpop.trf.xlu0
    %v594 = vpop.trf.xlu0
    %v595 = vpop.trf.xlu0
    %v596 = vpop.trf.xlu0
    %v597 = vpop.trf.xlu0
    %v598 = vpop.trf.xlu0
    %v599 = vpop.trf.xlu0
    %v600 = vpop.trf.xlu0
    %v601 = vpop.trf.xlu0
    %v602 = vpop.trf.xlu0
    %v603 = vpop.trf.xlu0
    %v604 = vpop.trf.xlu0
    %v605 = vpop.trf.xlu0
    %v606 = vpop.trf.xlu0
    %v607 = vpop.trf.xlu0
    %609 = vset.pattern.permute.xlu0 0
    %610 = vperm.xlu0 %609, %v567
    %v611 = vpop.permute.xlu0 %610
    %v613 = vadd.f32 %v611, %v592
    %vm614 = vcmask 15360
    %615 = vst.msk [vmem:[#allocation2] sm:$0xff] %vm614, %v613
  $region33: #{bert_crf_forward.1} parent=0 // pred_fallthru
    _
  %p616 = scmp.gt.s32.totalorder 0, 0
  // Predicated region
  $region34: #{bert_crf_forward.1} parent=0 // pred_check
    %p617 = pneg %p616
  $region35: #{bert_crf_forward.1} parent=0 // pred_check_branch
    %619 = sbr.rel (%p617) target = $region37
  $region36: #{bert_crf_forward.1} parent=0 // pred_region
    %v620 = vld [vmem:[#allocation2] sm:$0xff]
    %v621 = vperm.slane %v620, 0
    %v622 = vadd.f32 %v621, %v534
    %v623 = vperm.slane %v620, 1
    %v624 = vadd.f32 %v623, %v538
    %vm625 = vcmp.gt.f32.partialorder %v624, %v622
    %v626 = vsel %vm625, %v624, %v622
    %v627 = vsel %vm625, 1, 0
    %v628 = vperm.slane %v620, 2
    %v629 = vadd.f32 %v628, %v542
    %vm630 = vcmp.gt.f32.partialorder %v629, %v626
    %v631 = vsel %vm630, %v629, %v626
    %v632 = vsel %vm630, 2, %v627
    %v633 = vperm.slane %v620, 3
    %v634 = vadd.f32 %v633, %v546
    %vm635 = vcmp.gt.f32.partialorder %v634, %v631
    %v636 = vsel %vm635, %v634, %v631
    %v637 = vsel %vm635, 3, %v632
    %v638 = vperm.slane %v620, 4
    %v639 = vadd.f32 %v638, %v550
    %vm640 = vcmp.gt.f32.partialorder %v639, %v636
    %v641 = vsel %vm640, %v639, %v636
    %v642 = vsel %vm640, 4, %v637
    %v643 = vperm.slane %v620, 5
    %v644 = vadd.f32 %v643, %v554
    %vm645 = vcmp.gt.f32.partialorder %v644, %v641
    %v646 = vsel %vm645, %v644, %v641
    %v647 = vsel %vm645, 5, %v642
    %v648 = vperm.slane %v620, 6
    %v649 = vadd.f32 %v648, %v558
    %vm650 = vcmp.gt.f32.partialorder %v649, %v646
    %v651 = vsel %vm650, %v649, %v646
    %v652 = vsel %vm650, 6, %v647
    %v653 = vperm.slane %v620, 7
    %v654 = vadd.f32 %v653, %v562
    %vm655 = vcmp.gt.f32.partialorder %v654, %v651
    %v656 = vsel %vm655, %v654, %v651
    %v657 = vsel %vm655, 7, %v652
    %s658 = smul.u32 %s23, 8
    %s659 = scalar_lea.vmem [#allocation4], %s658
    %vm660 = vcmask 15360
    %661 = vst.msk [vmem:[%s659] sm:$0xff] %vm660, %v657
    %v662 = vld [vmem:[#allocation3] sm:$0x1]
    %v663 = vld [vmem:[#allocation3 + $0x8] sm:$0x1]
    %v666 = vrot.slane %v663, 7
    %vm667 = vcmask 1041409
    %v668 = vsel %vm667, %v666, %v662
    %670 = vxpose.xlu0.b32.start [1/16] %v668, 128
    %671 = vxpose.xlu0.b32.cont [2/16] 0.0, 128
    %672 = vxpose.xlu0.b32.cont [3/16] 0.0, 128
    %673 = vxpose.xlu0.b32.cont [4/16] 0.0, 128
    %674 = vxpose.xlu0.b32.cont [5/16] 0.0, 128
    %675 = vxpose.xlu0.b32.cont [6/16] 0.0, 128
    %676 = vxpose.xlu0.b32.cont [7/16] 0.0, 128
    %677 = vxpose.xlu0.b32.cont [8/16] 0.0, 128
    %678 = vxpose.xlu0.b32.cont [9/16] 0.0, 128
    %679 = vxpose.xlu0.b32.cont [10/16] 0.0, 128
    %680 = vxpose.xlu0.b32.cont [11/16] 0.0, 128
    %681 = vxpose.xlu0.b32.cont [12/16] 0.0, 128
    %682 = vxpose.xlu0.b32.cont [13/16] 0.0, 128
    %683 = vxpose.xlu0.b32.cont [14/16] 0.0, 128
    %684 = vxpose.xlu0.b32.cont [15/16] 0.0, 128
    %685 = vxpose.xlu0.b32.end [16/16] 0.0, 128
    %v686 = vpop.trf.xlu0
    %v687 = vpop.trf.xlu0
    %v688 = vpop.trf.xlu0
    %v689 = vpop.trf.xlu0
    %v690 = vpop.trf.xlu0
    %v691 = vpop.trf.xlu0
    %v692 = vpop.trf.xlu0
    %v693 = vpop.trf.xlu0
    %v694 = vpop.trf.xlu0
    %v695 = vpop.trf.xlu0
    %v696 = vpop.trf.xlu0
    %v697 = vpop.trf.xlu0
    %v698 = vpop.trf.xlu0
    %v699 = vpop.trf.xlu0
    %v700 = vpop.trf.xlu0
    %v701 = vpop.trf.xlu0
    %v702 = vadd.f32 %v656, %v686
    %703 = vst.msk [vmem:[#allocation2] sm:$0xff] %vm660, %v702
  $region37: #{bert_crf_forward.1} parent=0 // pred_fallthru
    _
  %v704 = vld [vmem:[#allocation2] sm:$0xff]
  %v705 = vperm.slane %v704, 0
  %v706 = vadd.f32 %v705, %v534
  %v707 = vperm.slane %v704, 1
  %v708 = vadd.f32 %v707, %v538
  %vm709 = vcmp.gt.f32.partialorder %v708, %v706
  %v710 = vsel %vm709, %v708, %v706
  %v711 = vsel %vm709, 1, 0
  %v712 = vperm.slane %v704, 2
  %v713 = vadd.f32 %v712, %v542
  %vm714 = vcmp.gt.f32.partialorder %v713, %v710
  %v715 = vsel %vm714, %v713, %v710
  %v716 = vsel %vm714, 2, %v711
  %v717 = vperm.slane %v704, 3
  %v718 = vadd.f32 %v717, %v546
  %vm719 = vcmp.gt.f32.partialorder %v718, %v715
  %v720 = vsel %vm719, %v718, %v715
  %v721 = vsel %vm719, 3, %v716
  %v722 = vperm.slane %v704, 4
  %v723 = vadd.f32 %v722, %v550
  %vm724 = vcmp.gt.f32.partialorder %v723, %v720
  %v725 = vsel %vm724, %v723, %v720
  %v726 = vsel %vm724, 4, %v721
  %v727 = vperm.slane %v704, 5
  %v728 = vadd.f32 %v727, %v554
  %vm729 = vcmp.gt.f32.partialorder %v728, %v725
  %v730 = vsel %vm729, %v728, %v725
  %v731 = vsel %vm729, 5, %v726
  %v732 = vperm.slane %v704, 6
  %v733 = vadd.f32 %v732, %v558
  %vm734 = vcmp.gt.f32.partialorder %v733, %v730
  %v735 = vsel %vm734, %v733, %v730
  %v736 = vsel %vm734, 6, %v731
  %v737 = vperm.slane %v704, 7
  %v738 = vadd.f32 %v737, %v562
  %vm739 = vcmp.gt.f32.partialorder %v738, %v735
  %v740 = vsel %vm739, %v738, %v735
  %v741 = vsel %vm739, 7, %v736
  %s742 = sadd.s32 %s23, 1
  %s743 = smul.u32 %s742, 8
  %s744 = scalar_lea.vmem [#allocation4], %s743
  %vm745 = vcmask 15360
  %746 = vst.msk [vmem:[%s744] sm:$0xff] %vm745, %v741
  %v747 = vld [vmem:[#allocation3 + $0x1] sm:$0x1]
  %v748 = vld [vmem:[#allocation3 + $0x9] sm:$0x1]
  %v751 = vrot.slane %v748, 7
  %vm752 = vcmask 1041409
  %v753 = vsel %vm752, %v751, %v747
  %755 = vxpose.xlu0.b32.start [1/16] %v753, 128
  %756 = vxpose.xlu0.b32.cont [2/16] 0.0, 128
  %757 = vxpose.xlu0.b32.cont [3/16] 0.0, 128
  %758 = vxpose.xlu0.b32.cont [4/16] 0.0, 128
  %759 = vxpose.xlu0.b32.cont [5/16] 0.0, 128
  %760 = vxpose.xlu0.b32.cont [6/16] 0.0, 128
  %761 = vxpose.xlu0.b32.cont [7/16] 0.0, 128
  %762 = vxpose.xlu0.b32.cont [8/16] 0.0, 128
  %763 = vxpose.xlu0.b32.cont [9/16] 0.0, 128
  %764 = vxpose.xlu0.b32.cont [10/16] 0.0, 128
  %765 = vxpose.xlu0.b32.cont [11/16] 0.0, 128
  %766 = vxpose.xlu0.b32.cont [12/16] 0.0, 128
  %767 = vxpose.xlu0.b32.cont [13/16] 0.0, 128
  %768 = vxpose.xlu0.b32.cont [14/16] 0.0, 128
  %769 = vxpose.xlu0.b32.cont [15/16] 0.0, 128
  %770 = vxpose.xlu0.b32.end [16/16] 0.0, 128
  %v771 = vpop.trf.xlu0
  %v772 = vpop.trf.xlu0
  %v773 = vpop.trf.xlu0
  %v774 = vpop.trf.xlu0
  %v775 = vpop.trf.xlu0
  %v776 = vpop.trf.xlu0
  %v777 = vpop.trf.xlu0
  %v778 = vpop.trf.xlu0
  %v779 = vpop.trf.xlu0
  %v780 = vpop.trf.xlu0
  %v781 = vpop.trf.xlu0
  %v782 = vpop.trf.xlu0
  %v783 = vpop.trf.xlu0
  %v784 = vpop.trf.xlu0
  %v785 = vpop.trf.xlu0
  %v786 = vpop.trf.xlu0
  %v787 = vadd.f32 %v740, %v771
  %v788 = vperm.slane %v787, 0
  %v789 = vadd.f32 %v788, %v534
  %v790 = vperm.slane %v787, 1
  %v791 = vadd.f32 %v790, %v538
  %vm792 = vcmp.gt.f32.partialorder %v791, %v789
  %v793 = vsel %vm792, %v791, %v789
  %v794 = vsel %vm792, 1, 0
  %v795 = vperm.slane %v787, 2
  %v796 = vadd.f32 %v795, %v542
  %vm797 = vcmp.gt.f32.partialorder %v796, %v793
  %v798 = vsel %vm797, %v796, %v793
  %v799 = vsel %vm797, 2, %v794
  %v800 = vperm.slane %v787, 3
  %v801 = vadd.f32 %v800, %v546
  %vm802 = vcmp.gt.f32.partialorder %v801, %v798
  %v803 = vsel %vm802, %v801, %v798
  %v804 = vsel %vm802, 3, %v799
  %v805 = vperm.slane %v787, 4
  %v806 = vadd.f32 %v805, %v550
  %vm807 = vcmp.gt.f32.partialorder %v806, %v803
  %v808 = vsel %vm807, %v806, %v803
  %v809 = vsel %vm807, 4, %v804
  %v810 = vperm.slane %v787, 5
  %v811 = vadd.f32 %v810, %v554
  %vm812 = vcmp.gt.f32.partialorder %v811, %v808
  %v813 = vsel %vm812, %v811, %v808
  %v814 = vsel %vm812, 5, %v809
  %v815 = vperm.slane %v787, 6
  %v816 = vadd.f32 %v815, %v558
  %vm817 = vcmp.gt.f32.partialorder %v816, %v813
  %v818 = vsel %vm817, %v816, %v813
  %v819 = vsel %vm817, 6, %v814
  %v820 = vperm.slane %v787, 7
  %v821 = vadd.f32 %v820, %v562
  %vm822 = vcmp.gt.f32.partialorder %v821, %v818
  %v823 = vsel %vm822, %v821, %v818
  %v824 = vsel %vm822, 7, %v819
  %s825 = sadd.s32 %s23, 2
  %s826 = smul.u32 %s825, 8
  %s827 = scalar_lea.vmem [#allocation4], %s826
  %828 = vst.msk [vmem:[%s827] sm:$0xff] %vm745, %v824
  %v829 = vld [vmem:[#allocation3 + $0x2] sm:$0x1]
  %v830 = vld [vmem:[#allocation3 + $0xa] sm:$0x1]
  %v833 = vrot.slane %v830, 7
  %v834 = vsel %vm752, %v833, %v829
  %836 = vxpose.xlu0.b32.start [1/16] %v834, 128
  %837 = vxpose.xlu0.b32.cont [2/16] 0.0, 128
  %838 = vxpose.xlu0.b32.cont [3/16] 0.0, 128
  %839 = vxpose.xlu0.b32.cont [4/16] 0.0, 128
  %840 = vxpose.xlu0.b32.cont [5/16] 0.0, 128
  %841 = vxpose.xlu0.b32.cont [6/16] 0.0, 128
  %842 = vxpose.xlu0.b32.cont [7/16] 0.0, 128
  %843 = vxpose.xlu0.b32.cont [8/16] 0.0, 128
  %844 = vxpose.xlu0.b32.cont [9/16] 0.0, 128
  %845 = vxpose.xlu0.b32.cont [10/16] 0.0, 128
  %846 = vxpose.xlu0.b32.cont [11/16] 0.0, 128
  %847 = vxpose.xlu0.b32.cont [12/16] 0.0, 128
  %848 = vxpose.xlu0.b32.cont [13/16] 0.0, 128
  %849 = vxpose.xlu0.b32.cont [14/16] 0.0, 128
  %850 = vxpose.xlu0.b32.cont [15/16] 0.0, 128
  %851 = vxpose.xlu0.b32.end [16/16] 0.0, 128
  %v852 = vpop.trf.xlu0
  %v853 = vpop.trf.xlu0
  %v854 = vpop.trf.xlu0
  %v855 = vpop.trf.xlu0
  %v856 = vpop.trf.xlu0
  %v857 = vpop.trf.xlu0
  %v858 = vpop.trf.xlu0
  %v859 = vpop.trf.xlu0
  %v860 = vpop.trf.xlu0
  %v861 = vpop.trf.xlu0
  %v862 = vpop.trf.xlu0
  %v863 = vpop.trf.xlu0
  %v864 = vpop.trf.xlu0
  %v865 = vpop.trf.xlu0
  %v866 = vpop.trf.xlu0
  %v867 = vpop.trf.xlu0
  %v868 = vadd.f32 %v823, %v852
  %v869 = vperm.slane %v868, 0
  %v870 = vadd.f32 %v869, %v534
  %v871 = vperm.slane %v868, 1
  %v872 = vadd.f32 %v871, %v538
  %vm873 = vcmp.gt.f32.partialorder %v872, %v870
  %v874 = vsel %vm873, %v872, %v870
  %v875 = vsel %vm873, 1, 0
  %v876 = vperm.slane %v868, 2
  %v877 = vadd.f32 %v876, %v542
  %vm878 = vcmp.gt.f32.partialorder %v877, %v874
  %v879 = vsel %vm878, %v877, %v874
  %v880 = vsel %vm878, 2, %v875
  %v881 = vperm.slane %v868, 3
  %v882 = vadd.f32 %v881, %v546
  %vm883 = vcmp.gt.f32.partialorder %v882, %v879
  %v884 = vsel %vm883, %v882, %v879
  %v885 = vsel %vm883, 3, %v880
  %v886 = vperm.slane %v868, 4
  %v887 = vadd.f32 %v886, %v550
  %vm888 = vcmp.gt.f32.partialorder %v887, %v884
  %v889 = vsel %vm888, %v887, %v884
  %v890 = vsel %vm888, 4, %v885
  %v891 = vperm.slane %v868, 5
  %v892 = vadd.f32 %v891, %v554
  %vm893 = vcmp.gt.f32.partialorder %v892, %v889
  %v894 = vsel %vm893, %v892, %v889
  %v895 = vsel %vm893, 5, %v890
  %v896 = vperm.slane %v868, 6
  %v897 = vadd.f32 %v896, %v558
  %vm898 = vcmp.gt.f32.partialorder %v897, %v894
  %v899 = vsel %vm898, %v897, %v894
  %v900 = vsel %vm898, 6, %v895
  %v901 = vperm.slane %v868, 7
  %v902 = vadd.f32 %v901, %v562
  %vm903 = vcmp.gt.f32.partialorder %v902, %v899
  %v904 = vsel %vm903, %v902, %v899
  %v905 = vsel %vm903, 7, %v900
  %s906 = sadd.s32 %s23, 3
  %s907 = smul.u32 %s906, 8
  %s908 = scalar_lea.vmem [#allocation4], %s907
  %909 = vst.msk [vmem:[%s908] sm:$0xff] %vm745, %v905
  %v910 = vld [vmem:[#allocation3 + $0x3] sm:$0x1]
  %v911 = vld [vmem:[#allocation3 + $0xb] sm:$0x1]
  %v914 = vrot.slane %v911, 7
  %v915 = vsel %vm752, %v914, %v910
  %917 = vxpose.xlu0.b32.start [1/16] %v915, 128
  %918 = vxpose.xlu0.b32.cont [2/16] 0.0, 128
  %919 = vxpose.xlu0.b32.cont [3/16] 0.0, 128
  %920 = vxpose.xlu0.b32.cont [4/16] 0.0, 128
  %921 = vxpose.xlu0.b32.cont [5/16] 0.0, 128
  %922 = vxpose.xlu0.b32.cont [6/16] 0.0, 128
  %923 = vxpose.xlu0.b32.cont [7/16] 0.0, 128
  %924 = vxpose.xlu0.b32.cont [8/16] 0.0, 128
  %925 = vxpose.xlu0.b32.cont [9/16] 0.0, 128
  %926 = vxpose.xlu0.b32.cont [10/16] 0.0, 128
  %927 = vxpose.xlu0.b32.cont [11/16] 0.0, 128
  %928 = vxpose.xlu0.b32.cont [12/16] 0.0, 128
  %929 = vxpose.xlu0.b32.cont [13/16] 0.0, 128
  %930 = vxpose.xlu0.b32.cont [14/16] 0.0, 128
  %931 = vxpose.xlu0.b32.cont [15/16] 0.0, 128
  %932 = vxpose.xlu0.b32.end [16/16] 0.0, 128
  %v933 = vpop.trf.xlu0
  %v934 = vpop.trf.xlu0
  %v935 = vpop.trf.xlu0
  %v936 = vpop.trf.xlu0
  %v937 = vpop.trf.xlu0
  %v938 = vpop.trf.xlu0
  %v939 = vpop.trf.xlu0
  %v940 = vpop.trf.xlu0
  %v941 = vpop.trf.xlu0
  %v942 = vpop.trf.xlu0
  %v943 = vpop.trf.xlu0
  %v944 = vpop.trf.xlu0
  %v945 = vpop.trf.xlu0
  %v946 = vpop.trf.xlu0
  %v947 = vpop.trf.xlu0
  %v948 = vpop.trf.xlu0
  %v949 = vadd.f32 %v904, %v933
  %v950 = vperm.slane %v949, 0
  %v951 = vadd.f32 %v950, %v534
  %v952 = vperm.slane %v949, 1
  %v953 = vadd.f32 %v952, %v538
  %vm954 = vcmp.gt.f32.partialorder %v953, %v951
  %v955 = vsel %vm954, %v953, %v951
  %v956 = vsel %vm954, 1, 0
  %v957 = vperm.slane %v949, 2
  %v958 = vadd.f32 %v957, %v542
  %vm959 = vcmp.gt.f32.partialorder %v958, %v955
  %v960 = vsel %vm959, %v958, %v955
  %v961 = vsel %vm959, 2, %v956
  %v962 = vperm.slane %v949, 3
  %v963 = vadd.f32 %v962, %v546
  %vm964 = vcmp.gt.f32.partialorder %v963, %v960
  %v965 = vsel %vm964, %v963, %v960
  %v966 = vsel %vm964, 3, %v961
  %v967 = vperm.slane %v949, 4
  %v968 = vadd.f32 %v967, %v550
  %vm969 = vcmp.gt.f32.partialorder %v968, %v965
  %v970 = vsel %vm969, %v968, %v965
  %v971 = vsel %vm969, 4, %v966
  %v972 = vperm.slane %v949, 5
  %v973 = vadd.f32 %v972, %v554
  %vm974 = vcmp.gt.f32.partialorder %v973, %v970
  %v975 = vsel %vm974, %v973, %v970
  %v976 = vsel %vm974, 5, %v971
  %v977 = vperm.slane %v949, 6
  %v978 = vadd.f32 %v977, %v558
  %vm979 = vcmp.gt.f32.partialorder %v978, %v975
  %v980 = vsel %vm979, %v978, %v975
  %v981 = vsel %vm979, 6, %v976
  %v982 = vperm.slane %v949, 7
  %v983 = vadd.f32 %v982, %v562
  %vm984 = vcmp.gt.f32.partialorder %v983, %v980
  %v985 = vsel %vm984, %v983, %v980
  %v986 = vsel %vm984, 7, %v981
  %s987 = sadd.s32 %s23, 4
  %s988 = smul.u32 %s987, 8
  %s989 = scalar_lea.vmem [#allocation4], %s988
  %990 = vst.msk [vmem:[%s989] sm:$0xff] %vm745, %v986
  %v991 = vld [vmem:[#allocation3 + $0x4] sm:$0x1]
  %v992 = vld [vmem:[#allocation3 + $0xc] sm:$0x1]
  %v995 = vrot.slane %v992, 7
  %v996 = vsel %vm752, %v995, %v991
  %998 = vxpose.xlu0.b32.start [1/16] %v996, 128
  %999 = vxpose.xlu0.b32.cont [2/16] 0.0, 128
  %1000 = vxpose.xlu0.b32.cont [3/16] 0.0, 128
  %1001 = vxpose.xlu0.b32.cont [4/16] 0.0, 128
  %1002 = vxpose.xlu0.b32.cont [5/16] 0.0, 128
  %1003 = vxpose.xlu0.b32.cont [6/16] 0.0, 128
  %1004 = vxpose.xlu0.b32.cont [7/16] 0.0, 128
  %1005 = vxpose.xlu0.b32.cont [8/16] 0.0, 128
  %1006 = vxpose.xlu0.b32.cont [9/16] 0.0, 128
  %1007 = vxpose.xlu0.b32.cont [10/16] 0.0, 128
  %1008 = vxpose.xlu0.b32.cont [11/16] 0.0, 128
  %1009 = vxpose.xlu0.b32.cont [12/16] 0.0, 128
  %1010 = vxpose.xlu0.b32.cont [13/16] 0.0, 128
  %1011 = vxpose.xlu0.b32.cont [14/16] 0.0, 128
  %1012 = vxpose.xlu0.b32.cont [15/16] 0.0, 128
  %1013 = vxpose.xlu0.b32.end [16/16] 0.0, 128
  %v1014 = vpop.trf.xlu0
  %v1015 = vpop.trf.xlu0
  %v1016 = vpop.trf.xlu0
  %v1017 = vpop.trf.xlu0
  %v1018 = vpop.trf.xlu0
  %v1019 = vpop.trf.xlu0
  %v1020 = vpop.trf.xlu0
  %v1021 = vpop.trf.xlu0
  %v1022 = vpop.trf.xlu0
  %v1023 = vpop.trf.xlu0
  %v1024 = vpop.trf.xlu0
  %v1025 = vpop.trf.xlu0
  %v1026 = vpop.trf.xlu0
  %v1027 = vpop.trf.xlu0
  %v1028 = vpop.trf.xlu0
  %v1029 = vpop.trf.xlu0
  %v1030 = vadd.f32 %v985, %v1014
  %v1031 = vperm.slane %v1030, 0
  %v1032 = vadd.f32 %v1031, %v534
  %v1033 = vperm.slane %v1030, 1
  %v1034 = vadd.f32 %v1033, %v538
  %vm1035 = vcmp.gt.f32.partialorder %v1034, %v1032
  %v1036 = vsel %vm1035, %v1034, %v1032
  %v1037 = vsel %vm1035, 1, 0
  %v1038 = vperm.slane %v1030, 2
  %v1039 = vadd.f32 %v1038, %v542
  %vm1040 = vcmp.gt.f32.partialorder %v1039, %v1036
  %v1041 = vsel %vm1040, %v1039, %v1036
  %v1042 = vsel %vm1040, 2, %v1037
  %v1043 = vperm.slane %v1030, 3
  %v1044 = vadd.f32 %v1043, %v546
  %vm1045 = vcmp.gt.f32.partialorder %v1044, %v1041
  %v1046 = vsel %vm1045, %v1044, %v1041
  %v1047 = vsel %vm1045, 3, %v1042
  %v1048 = vperm.slane %v1030, 4
  %v1049 = vadd.f32 %v1048, %v550
  %vm1050 = vcmp.gt.f32.partialorder %v1049, %v1046
  %v1051 = vsel %vm1050, %v1049, %v1046
  %v1052 = vsel %vm1050, 4, %v1047
  %v1053 = vperm.slane %v1030, 5
  %v1054 = vadd.f32 %v1053, %v554
  %vm1055 = vcmp.gt.f32.partialorder %v1054, %v1051
  %v1056 = vsel %vm1055, %v1054, %v1051
  %v1057 = vsel %vm1055, 5, %v1052
  %v1058 = vperm.slane %v1030, 6
  %v1059 = vadd.f32 %v1058, %v558
  %vm1060 = vcmp.gt.f32.partialorder %v1059, %v1056
  %v1061 = vsel %vm1060, %v1059, %v1056
  %v1062 = vsel %vm1060, 6, %v1057
  %v1063 = vperm.slane %v1030, 7
  %v1064 = vadd.f32 %v1063, %v562
  %vm1065 = vcmp.gt.f32.partialorder %v1064, %v1061
  %v1066 = vsel %vm1065, %v1064, %v1061
  %v1067 = vsel %vm1065, 7, %v1062
  %s1068 = sadd.s32 %s23, 5
  %s1069 = smul.u32 %s1068, 8
  %s1070 = scalar_lea.vmem [#allocation4], %s1069
  %1071 = vst.msk [vmem:[%s1070] sm:$0xff] %vm745, %v1067
  %v1072 = vld [vmem:[#allocation3 + $0x5] sm:$0x1]
  %v1073 = vld [vmem:[#allocation3 + $0xd] sm:$0x1]
  %v1076 = vrot.slane %v1073, 7
  %v1077 = vsel %vm752, %v1076, %v1072
  %1079 = vxpose.xlu0.b32.start [1/16] %v1077, 128
  %1080 = vxpose.xlu0.b32.cont [2/16] 0.0, 128
  %1081 = vxpose.xlu0.b32.cont [3/16] 0.0, 128
  %1082 = vxpose.xlu0.b32.cont [4/16] 0.0, 128
  %1083 = vxpose.xlu0.b32.cont [5/16] 0.0, 128
  %1084 = vxpose.xlu0.b32.cont [6/16] 0.0, 128
  %1085 = vxpose.xlu0.b32.cont [7/16] 0.0, 128
  %1086 = vxpose.xlu0.b32.cont [8/16] 0.0, 128
  %1087 = vxpose.xlu0.b32.cont [9/16] 0.0, 128
  %1088 = vxpose.xlu0.b32.cont [10/16] 0.0, 128
  %1089 = vxpose.xlu0.b32.cont [11/16] 0.0, 128
  %1090 = vxpose.xlu0.b32.cont [12/16] 0.0, 128
  %1091 = vxpose.xlu0.b32.cont [13/16] 0.0, 128
  %1092 = vxpose.xlu0.b32.cont [14/16] 0.0, 128
  %1093 = vxpose.xlu0.b32.cont [15/16] 0.0, 128
  %1094 = vxpose.xlu0.b32.end [16/16] 0.0, 128
  %v1095 = vpop.trf.xlu0
  %v1096 = vpop.trf.xlu0
  %v1097 = vpop.trf.xlu0
  %v1098 = vpop.trf.xlu0
  %v1099 = vpop.trf.xlu0
  %v1100 = vpop.trf.xlu0
  %v1101 = vpop.trf.xlu0
  %v1102 = vpop.trf.xlu0
  %v1103 = vpop.trf.xlu0
  %v1104 = vpop.trf.xlu0
  %v1105 = vpop.trf.xlu0
  %v1106 = vpop.trf.xlu0
  %v1107 = vpop.trf.xlu0
  %v1108 = vpop.trf.xlu0
  %v1109 = vpop.trf.xlu0
  %v1110 = vpop.trf.xlu0
  %v1111 = vadd.f32 %v1066, %v1095
  %v1112 = vperm.slane %v1111, 0
  %v1113 = vadd.f32 %v1112, %v534
  %v1114 = vperm.slane %v1111, 1
  %v1115 = vadd.f32 %v1114, %v538
  %vm1116 = vcmp.gt.f32.partialorder %v1115, %v1113
  %v1117 = vsel %vm1116, %v1115, %v1113
  %v1118 = vsel %vm1116, 1, 0
  %v1119 = vperm.slane %v1111, 2
  %v1120 = vadd.f32 %v1119, %v542
  %vm1121 = vcmp.gt.f32.partialorder %v1120, %v1117
  %v1122 = vsel %vm1121, %v1120, %v1117
  %v1123 = vsel %vm1121, 2, %v1118
  %v1124 = vperm.slane %v1111, 3
  %v1125 = vadd.f32 %v1124, %v546
  %vm1126 = vcmp.gt.f32.partialorder %v1125, %v1122
  %v1127 = vsel %vm1126, %v1125, %v1122
  %v1128 = vsel %vm1126, 3, %v1123
  %v1129 = vperm.slane %v1111, 4
  %v1130 = vadd.f32 %v1129, %v550
  %vm1131 = vcmp.gt.f32.partialorder %v1130, %v1127
  %v1132 = vsel %vm1131, %v1130, %v1127
  %v1133 = vsel %vm1131, 4, %v1128
  %v1134 = vperm.slane %v1111, 5
  %v1135 = vadd.f32 %v1134, %v554
  %vm1136 = vcmp.gt.f32.partialorder %v1135, %v1132
  %v1137 = vsel %vm1136, %v1135, %v1132
  %v1138 = vsel %vm1136, 5, %v1133
  %v1139 = vperm.slane %v1111, 6
  %v1140 = vadd.f32 %v1139, %v558
  %vm1141 = vcmp.gt.f32.partialorder %v1140, %v1137
  %v1142 = vsel %vm1141, %v1140, %v1137
  %v1143 = vsel %vm1141, 6, %v1138
  %v1144 = vperm.slane %v1111, 7
  %v1145 = vadd.f32 %v1144, %v562
  %vm1146 = vcmp.gt.f32.partialorder %v1145, %v1142
  %v1147 = vsel %vm1146, %v1145, %v1142
  %v1148 = vsel %vm1146, 7, %v1143
  %s1149 = sadd.s32 %s23, 6
  %s1150 = smul.u32 %s1149, 8
  %s1151 = scalar_lea.vmem [#allocation4], %s1150
  %1152 = vst.msk [vmem:[%s1151] sm:$0xff] %vm745, %v1148
  %v1153 = vld [vmem:[#allocation3 + $0x6] sm:$0x1]
  %v1154 = vld [vmem:[#allocation3 + $0xe] sm:$0x1]
  %v1157 = vrot.slane %v1154, 7
  %v1158 = vsel %vm752, %v1157, %v1153
  %1160 = vxpose.xlu0.b32.start [1/16] %v1158, 128
  %1161 = vxpose.xlu0.b32.cont [2/16] 0.0, 128
  %1162 = vxpose.xlu0.b32.cont [3/16] 0.0, 128
  %1163 = vxpose.xlu0.b32.cont [4/16] 0.0, 128
  %1164 = vxpose.xlu0.b32.cont [5/16] 0.0, 128
  %1165 = vxpose.xlu0.b32.cont [6/16] 0.0, 128
  %1166 = vxpose.xlu0.b32.cont [7/16] 0.0, 128
  %1167 = vxpose.xlu0.b32.cont [8/16] 0.0, 128
  %1168 = vxpose.xlu0.b32.cont [9/16] 0.0, 128
  %1169 = vxpose.xlu0.b32.cont [10/16] 0.0, 128
  %1170 = vxpose.xlu0.b32.cont [11/16] 0.0, 128
  %1171 = vxpose.xlu0.b32.cont [12/16] 0.0, 128
  %1172 = vxpose.xlu0.b32.cont [13/16] 0.0, 128
  %1173 = vxpose.xlu0.b32.cont [14/16] 0.0, 128
  %1174 = vxpose.xlu0.b32.cont [15/16] 0.0, 128
  %1175 = vxpose.xlu0.b32.end [16/16] 0.0, 128
  %v1176 = vpop.trf.xlu0
  %v1177 = vpop.trf.xlu0
  %v1178 = vpop.trf.xlu0
  %v1179 = vpop.trf.xlu0
  %v1180 = vpop.trf.xlu0
  %v1181 = vpop.trf.xlu0
  %v1182 = vpop.trf.xlu0
  %v1183 = vpop.trf.xlu0
  %v1184 = vpop.trf.xlu0
  %v1185 = vpop.trf.xlu0
  %v1186 = vpop.trf.xlu0
  %v1187 = vpop.trf.xlu0
  %v1188 = vpop.trf.xlu0
  %v1189 = vpop.trf.xlu0
  %v1190 = vpop.trf.xlu0
  %v1191 = vpop.trf.xlu0
  %v1192 = vadd.f32 %v1147, %v1176
  %v1193 = vperm.slane %v1192, 0
  %v1194 = vadd.f32 %v1193, %v534
  %v1195 = vperm.slane %v1192, 1
  %v1196 = vadd.f32 %v1195, %v538
  %vm1197 = vcmp.gt.f32.partialorder %v1196, %v1194
  %v1198 = vsel %vm1197, %v1196, %v1194
  %v1199 = vsel %vm1197, 1, 0
  %v1200 = vperm.slane %v1192, 2
  %v1201 = vadd.f32 %v1200, %v542
  %vm1202 = vcmp.gt.f32.partialorder %v1201, %v1198
  %v1203 = vsel %vm1202, %v1201, %v1198
  %v1204 = vsel %vm1202, 2, %v1199
  %v1205 = vperm.slane %v1192, 3
  %v1206 = vadd.f32 %v1205, %v546
  %vm1207 = vcmp.gt.f32.partialorder %v1206, %v1203
  %v1208 = vsel %vm1207, %v1206, %v1203
  %v1209 = vsel %vm1207, 3, %v1204
  %v1210 = vperm.slane %v1192, 4
  %v1211 = vadd.f32 %v1210, %v550
  %vm1212 = vcmp.gt.f32.partialorder %v1211, %v1208
  %v1213 = vsel %vm1212, %v1211, %v1208
  %v1214 = vsel %vm1212, 4, %v1209
  %v1215 = vperm.slane %v1192, 5
  %v1216 = vadd.f32 %v1215, %v554
  %vm1217 = vcmp.gt.f32.partialorder %v1216, %v1213
  %v1218 = vsel %vm1217, %v1216, %v1213
  %v1219 = vsel %vm1217, 5, %v1214
  %v1220 = vperm.slane %v1192, 6
  %v1221 = vadd.f32 %v1220, %v558
  %vm1222 = vcmp.gt.f32.partialorder %v1221, %v1218
  %v1223 = vsel %vm1222, %v1221, %v1218
  %v1224 = vsel %vm1222, 6, %v1219
  %v1225 = vperm.slane %v1192, 7
  %v1226 = vadd.f32 %v1225, %v562
  %vm1227 = vcmp.gt.f32.partialorder %v1226, %v1223
  %v1228 = vsel %vm1227, %v1226, %v1223
  %v1229 = vsel %vm1227, 7, %v1224
  %s1230 = sadd.s32 %s23, 7
  %s1231 = smul.u32 %s1230, 8
  %s1232 = scalar_lea.vmem [#allocation4], %s1231
  %1233 = vst.msk [vmem:[%s1232] sm:$0xff] %vm745, %v1229
  %v1234 = vld [vmem:[#allocation3 + $0x7] sm:$0x1]
  %v1235 = vld [vmem:[#allocation3 + $0xf] sm:$0x1]
  %v1238 = vrot.slane %v1235, 7
  %v1239 = vsel %vm752, %v1238, %v1234
  %1241 = vxpose.xlu0.b32.start [1/16] %v1239, 128
  %1242 = vxpose.xlu0.b32.cont [2/16] 0.0, 128
  %1243 = vxpose.xlu0.b32.cont [3/16] 0.0, 128
  %1244 = vxpose.xlu0.b32.cont [4/16] 0.0, 128
  %1245 = vxpose.xlu0.b32.cont [5/16] 0.0, 128
  %1246 = vxpose.xlu0.b32.cont [6/16] 0.0, 128
  %1247 = vxpose.xlu0.b32.cont [7/16] 0.0, 128
  %1248 = vxpose.xlu0.b32.cont [8/16] 0.0, 128
  %1249 = vxpose.xlu0.b32.cont [9/16] 0.0, 128
  %1250 = vxpose.xlu0.b32.cont [10/16] 0.0, 128
  %1251 = vxpose.xlu0.b32.cont [11/16] 0.0, 128
  %1252 = vxpose.xlu0.b32.cont [12/16] 0.0, 128
  %1253 = vxpose.xlu0.b32.cont [13/16] 0.0, 128
  %1254 = vxpose.xlu0.b32.cont [14/16] 0.0, 128
  %1255 = vxpose.xlu0.b32.cont [15/16] 0.0, 128
  %1256 = vxpose.xlu0.b32.end [16/16] 0.0, 128
  %v1257 = vpop.trf.xlu0
  %v1258 = vpop.trf.xlu0
  %v1259 = vpop.trf.xlu0
  %v1260 = vpop.trf.xlu0
  %v1261 = vpop.trf.xlu0
  %v1262 = vpop.trf.xlu0
  %v1263 = vpop.trf.xlu0
  %v1264 = vpop.trf.xlu0
  %v1265 = vpop.trf.xlu0
  %v1266 = vpop.trf.xlu0
  %v1267 = vpop.trf.xlu0
  %v1268 = vpop.trf.xlu0
  %v1269 = vpop.trf.xlu0
  %v1270 = vpop.trf.xlu0
  %v1271 = vpop.trf.xlu0
  %v1272 = vpop.trf.xlu0
  %v1273 = vadd.f32 %v1228, %v1257
  %1274 = vst.msk [vmem:[#allocation2] sm:$0xff] %vm745, %v1273
  // Predicated region
  $region38: #{bert_crf_forward.1} parent=0 // pred_check
    %p1275 = pneg %p24
  $region39: #{bert_crf_forward.1} parent=0 // pred_check_branch
    %1277 = sbr.rel (%p1275) target = $region41
  $region40: #{bert_crf_forward.1} parent=0 // pred_region
    %v1278 = vlaneseq
    %v1279 = vshrl.u32 %v1278, 7
    %v1280 = vld [vmem:[#allocation2] sm:$0xff]
    %v1281 = vld [vmem:[%s4] sm:$0xff]
    %1283 = vset.pattern.permute.xlu0 0
    %1284 = vperm.xlu0 %1283, %v1281
    %v1285 = vpop.permute.xlu0 %1284
    %v1287 = vadd.f32 %v1280, %v1285
    %v1288 = vsel %vm745, %v1287, -inf
    %v1289 = vrot.slane %v1288, 4
    %v1290 = vmax.f32 %v1288, %v1289
    %v1291 = vrot.slane %v1290, 2
    %v1292 = vmax.f32 %v1290, %v1291
    %v1293 = vrot.slane %v1292, 1
    %v1294 = vmax.f32 %v1292, %v1293
    %vm1295 = vcmp.eq.f32.partialorder %v1287, %v1294
    %v1296 = vsel %vm1295, %v1279, 8
    %v1297 = vsel %vm745, %v1296, 2147483647
    %v1298 = vrot.slane %v1297, 4
    %vm1299 = vcmp.lt.s32.totalorder %v1297, %v1298
    %v1300 = vsel %vm1299, %v1297, %v1298
    %v1301 = vrot.slane %v1300, 2
    %vm1302 = vcmp.lt.s32.totalorder %v1300, %v1301
    %v1303 = vsel %vm1302, %v1300, %v1301
    %v1304 = vrot.slane %v1303, 1
    %vm1305 = vcmp.lt.s32.totalorder %v1303, %v1304
    %v1306 = vsel %vm1305, %v1303, %v1304
    %s1307 = scalar_lea.vmem %s6, 7
    %vm1308 = vcmask 8192
    %1309 = vst.msk [vmem:[%s1307] sm:$0x1] %vm1308, %v1306
    %s1310 = scalar_lea.vmem [#allocation4], 56
    %v1311 = vld [vmem:[%s1310] sm:$0xff]
    %vm1312 = vcmp.eq.s32.totalorder %v1279, %v1306
    %v1313 = vsel %vm1312, %v1311, 0
    %v1314 = vsel %vm745, %v1313, 0
    %v1315 = vrot.slane %v1314, 4
    %v1316 = vadd.s32 %v1314, %v1315
    %v1317 = vrot.slane %v1316, 2
    %v1318 = vadd.s32 %v1316, %v1317
    %v1319 = vrot.slane %v1318, 1
    %v1320 = vadd.s32 %v1318, %v1319
    %s1321 = scalar_lea.vmem %s6, 6
    %1322 = vst.msk [vmem:[%s1321] sm:$0x1] %vm1308, %v1320
    %s1323 = scalar_lea.vmem [#allocation4], 48
    %v1324 = vld [vmem:[%s1323] sm:$0xff]
    %vm1325 = vcmp.eq.s32.totalorder %v1279, %v1320
    %v1326 = vsel %vm1325, %v1324, 0
    %v1327 = vsel %vm745, %v1326, 0
    %v1328 = vrot.slane %v1327, 4
    %v1329 = vadd.s32 %v1327, %v1328
    %v1330 = vrot.slane %v1329, 2
    %v1331 = vadd.s32 %v1329, %v1330
    %v1332 = vrot.slane %v1331, 1
    %v1333 = vadd.s32 %v1331, %v1332
    %s1334 = scalar_lea.vmem %s6, 5
    %1335 = vst.msk [vmem:[%s1334] sm:$0x1] %vm1308, %v1333
    %s1336 = scalar_lea.vmem [#allocation4], 40
    %v1337 = vld [vmem:[%s1336] sm:$0xff]
    %vm1338 = vcmp.eq.s32.totalorder %v1279, %v1333
    %v1339 = vsel %vm1338, %v1337, 0
    %v1340 = vsel %vm745, %v1339, 0
    %v1341 = vrot.slane %v1340, 4
    %v1342 = vadd.s32 %v1340, %v1341
    %v1343 = vrot.slane %v1342, 2
    %v1344 = vadd.s32 %v1342, %v1343
    %v1345 = vrot.slane %v1344, 1
    %v1346 = vadd.s32 %v1344, %v1345
    %s1347 = scalar_lea.vmem %s6, 4
    %1348 = vst.msk [vmem:[%s1347] sm:$0x1] %vm1308, %v1346
    %s1349 = scalar_lea.vmem [#allocation4], 32
    %v1350 = vld [vmem:[%s1349] sm:$0xff]
    %vm1351 = vcmp.eq.s32.totalorder %v1279, %v1346
    %v1352 = vsel %vm1351, %v1350, 0
    %v1353 = vsel %vm745, %v1352, 0
    %v1354 = vrot.slane %v1353, 4
    %v1355 = vadd.s32 %v1353, %v1354
    %v1356 = vrot.slane %v1355, 2
    %v1357 = vadd.s32 %v1355, %v1356
    %v1358 = vrot.slane %v1357, 1
    %v1359 = vadd.s32 %v1357, %v1358
    %s1360 = scalar_lea.vmem %s6, 3
    %1361 = vst.msk [vmem:[%s1360] sm:$0x1] %vm1308, %v1359
    %s1362 = scalar_lea.vmem [#allocation4], 24
    %v1363 = vld [vmem:[%s1362] sm:$0xff]
    %vm1364 = vcmp.eq.s32.totalorder %v1279, %v1359
    %v1365 = vsel %vm1364, %v1363, 0
    %v1366 = vsel %vm745, %v1365, 0
    %v1367 = vrot.slane %v1366, 4
    %v1368 = vadd.s32 %v1366, %v1367
    %v1369 = vrot.slane %v1368, 2
    %v1370 = vadd.s32 %v1368, %v1369
    %v1371 = vrot.slane %v1370, 1
    %v1372 = vadd.s32 %v1370, %v1371
    %s1373 = scalar_lea.vmem %s6, 2
    %1374 = vst.msk [vmem:[%s1373] sm:$0x1] %vm1308, %v1372
    %s1375 = scalar_lea.vmem [#allocation4], 16
    %v1376 = vld [vmem:[%s1375] sm:$0xff]
    %vm1377 = vcmp.eq.s32.totalorder %v1279, %v1372
    %v1378 = vsel %vm1377, %v1376, 0
    %v1379 = vsel %vm745, %v1378, 0
    %v1380 = vrot.slane %v1379, 4
    %v1381 = vadd.s32 %v1379, %v1380
    %v1382 = vrot.slane %v1381, 2
    %v1383 = vadd.s32 %v1381, %v1382
    %v1384 = vrot.slane %v1383, 1
    %v1385 = vadd.s32 %v1383, %v1384
    %s1386 = scalar_lea.vmem %s6, 1
    %1387 = vst.msk [vmem:[%s1386] sm:$0x1] %vm1308, %v1385
    %s1388 = scalar_lea.vmem [#allocation4], 8
    %v1389 = vld [vmem:[%s1388] sm:$0xff]
    %vm1390 = vcmp.eq.s32.totalorder %v1279, %v1385
    %v1391 = vsel %vm1390, %v1389, 0
    %v1392 = vsel %vm745, %v1391, 0
    %v1393 = vrot.slane %v1392, 4
    %v1394 = vadd.s32 %v1392, %v1393
    %v1395 = vrot.slane %v1394, 2
    %v1396 = vadd.s32 %v1394, %v1395
    %v1397 = vrot.slane %v1396, 1
    %v1398 = vadd.s32 %v1396, %v1397
    %1399 = vst.msk [vmem:[%s6] sm:$0x1] %vm1308, %v1398
  $region41: #{bert_crf_forward.1} parent=0 // pred_fallthru
    _
  // Predicated region
  $region42: #{bert_crf_forward.1} parent=0 // pred_check
    _
  $region43: #{bert_crf_forward.1} parent=0 // pred_check_branch
    %1401 = sbr.rel (0) target = $region45
  $region44: #{bert_crf_forward.1} parent=0 // pred_region
    _
  $region45: #{bert_crf_forward.1} parent=0 // pred_fallthru
    _
  // Predicated region
  $region46: #{bert_crf_forward.1} parent=0 // pred_check
    _
  $region47: #{bert_crf_forward.1} parent=0 // pred_check_branch
    %1403 = sbr.rel (0) target = $region49
  $region48: #{bert_crf_forward.1} parent=0 // pred_region
    _
  $region49: #{bert_crf_forward.1} parent=0 // pred_fallthru
    _

</llo_original>
